<compile_context>
chip_gen: v6e
topology: v6e:2x2x1
jax: 0.10.0
libtpu: 0.0.40
codegen_flags: <defaults>
</compile_context>

<pallas_src>
import functools

import jax
import jax.numpy as jnp
from jax.experimental import pallas as pl
from jax.experimental.pallas import tpu as pltpu

GATE_PAD = 8  # 4 LSTM gates (i, f, g, o) padded to the f32 sublane tile.


def sscl_kernel(x_ref, wlt_ref, bl_ref, wiht_ref, bg_ref, whh_ref, out_ref,
                gates_ref):
    """Fused Linear+ReLU -> LSTM(hidden=1) -> sigmoid for one batch tile.

    Batch-on-lanes layout: the lane (last) axis of every tensor is batch
    (times time for the matmul operands), so the MXU outputs, the gates
    scratch, the recurrence and the final store are all lane-dense.

    x_ref     : (1, EF, T*TB) bf16  windowed embeddings, col = t*TB + b
    wlt_ref   : (NF, EF)      bf16  linear weight, transposed
    bl_ref    : (NF, 1)       f32   linear bias
    wiht_ref  : (GP, NF)      f32   LSTM input->gate weights (rows i,f,g,o,+pad;
                                    row 2 pre-scaled by 2 for the tanh trick)
    bg_ref    : (GP, 1)       f32   b_ih + b_hh combined bias (row 2 x2)
    whh_ref   : (GP, 1)       f32   hidden->gate weights, hidden=1 (row 2 x2)
    out_ref   : (1, 1, TB)    f32   sigmoid(h_T) for this batch tile
    gates_ref : (T, GP, TB)   f32   VMEM scratch for gate pre-activations
    """
    T, GP, TB = gates_ref.shape

    # --- convStack (eval): Dropout = identity; Linear + ReLU on the MXU ------
    # N = T*TB lane-dense columns, K = EF on sublanes (no lane padding).
    conv = jnp.dot(wlt_ref[...], x_ref[0], preferred_element_type=jnp.float32)
    conv = jnp.maximum(conv + bl_ref[...], 0.0)               # (NF, T*TB) f32

    # --- LSTM gate pre-activations for all timesteps ---------------------
    # Re-chunk the lane axis into the leading scratch axis with static slices
    # so the serial loop reads one contiguous (GP, TB) tile per step.
    g_all = jnp.dot(wiht_ref[...], conv,
                    preferred_element_type=jnp.float32) + bg_ref[...]
    for t in range(T):                                        # static slices
        gates_ref[t] = g_all[:, t * TB:(t + 1) * TB]

    # Hoisted loop invariants (JAX does not CSE broadcast_in_dim).
    whh_b = whh_ref[...]                                      # (GP, 1)
    is_tanh_row = jax.lax.broadcasted_iota(jnp.int32, (GP, TB), 0) == 2

    def step(t, carry):
        h, c = carry                                          # (1, TB) f32 each
        g = gates_ref[t] + h * whh_b                          # (GP, TB)
        # Row 2 of wih/bg/whh was pre-scaled by 2 in the wrapper, so
        # tanh(x) = 2*sigmoid(2x) - 1 costs the same single EUP op as the
        # sigmoid gates (halves transcendentals on the recurrence chain).
        s = jax.nn.sigmoid(g)
        act = jnp.where(is_tanh_row, 2.0 * s - 1.0, s)
        i_g = act[0:1, :]
        f_g = act[1:2, :]
        g_g = act[2:3, :]
        o_g = act[3:4, :]
        c = f_g * c + i_g * g_g
        h = o_g * jnp.tanh(c)
        return h, c

    h0 = jnp.zeros((1, TB), jnp.float32)
    c0 = jnp.zeros((1, TB), jnp.float32)
    h, _ = jax.lax.fori_loop(0, T, step, (h0, c0), unroll=True)

    # "softmax" in the module is nn.Sigmoid on the last hidden state.
    out_ref[0] = jax.nn.sigmoid(h)


@functools.partial(jax.jit, static_argnames=("tb",))
def sscl_forward(x, wl, bl, wih, bg, whh, *, tb=None):
    """SSCL forward.

    x: (B, T, EF); wl: (EF, NF); bl: (1, NF); wih: (NF, 4); bg = b_ih + b_hh:
    (1, 4); whh: (1, 4). Gate columns in torch order (i, f, g, o).
    Returns sigmoid(h_T): (B,) f32.
    """
    B, T, EF = x.shape
    NF = wl.shape[1]
    GP = GATE_PAD

    if tb is None:
        # Batch tile = lane width: prefer 128/256 lanes (unmasked vregs, big
        # matmul N) with >= 2 grid steps (megacore + DMA pipelining). Batch is
        # on lanes now, so there is no multiple-of-16 sublane constraint; small
        # batches simply fall back to a single tile.
        if B % 256 == 0 and B >= 512:
            tb = 256
        elif B % 128 == 0 and B >= 256:
            tb = 128
        else:
            tb = B
        # Keep 2 double-buffered bf16 x tiles + f32 gates scratch well under
        # v7x's 32 MiB scoped-VMEM default.
        while (tb > 8 and B % (tb // 2) == 0
               and 2 * EF * T * tb * 2 + T * tb * GP * 4 > (16 << 20)):
            tb //= 2
    assert B % tb == 0, "batch must be divisible by the batch tile"
    grid_b = B // tb

    # Feature-major / batch-on-lanes layout: within each batch tile, columns
    # are t-major (col = t*tb + b) so every timestep is one contiguous lane
    # slab. bf16 halves HBM bytes for the dominant input.
    xt = (x.reshape(grid_b, tb, T, EF)
           .transpose(0, 3, 2, 1)                   # (G, EF, T, tb)
           .reshape(grid_b, EF, T * tb)
           .astype(jnp.bfloat16))
    wlt = wl.T.astype(jnp.bfloat16)                 # (NF, EF)
    bl_c = bl.reshape(NF, 1).astype(jnp.float32)

    # Gate rows (i, f, g, o) padded to GP=8 sublanes; the candidate-gate row
    # (index 2) is pre-scaled by 2 so the kernel can use tanh(x)=2*sigmoid(2x)-1.
    gate_scale = jnp.array([1.0, 1.0, 2.0, 1.0], jnp.float32)
    wiht_p = jnp.zeros((GP, NF), jnp.float32).at[:4, :].set(
        wih.T.astype(jnp.float32) * gate_scale[:, None])
    bg_p = jnp.zeros((GP, 1), jnp.float32).at[:4, 0].set(
        bg.reshape(4).astype(jnp.float32) * gate_scale)
    whh_p = jnp.zeros((GP, 1), jnp.float32).at[:4, 0].set(
        whh.reshape(4).astype(jnp.float32) * gate_scale)

    cost = pl.CostEstimate(
        flops=2 * B * T * EF * NF + 2 * B * T * NF * GP + 12 * B * T,
        transcendentals=B * T * (GP + 1) + B,
        bytes_accessed=xt.size * 2 + wlt.size * 2
                       + (bl_c.size + wiht_p.size + bg_p.size + whh_p.size) * 4
                       + B * 4,
    )

    out = pl.pallas_call(
        sscl_kernel,
        out_shape=jax.ShapeDtypeStruct((grid_b, 1, tb), jnp.float32),
        grid_spec=pltpu.PrefetchScalarGridSpec(
            num_scalar_prefetch=0,
            grid=(grid_b,),
            in_specs=[
                pl.BlockSpec((1, EF, T * tb), lambda g: (g, 0, 0)),  # x tile
                pl.BlockSpec((NF, EF), lambda g: (0, 0)),            # wl^T
                pl.BlockSpec((NF, 1), lambda g: (0, 0)),             # bl
                pl.BlockSpec((GP, NF), lambda g: (0, 0)),            # wih^T
                pl.BlockSpec((GP, 1), lambda g: (0, 0)),             # gate bias
                pl.BlockSpec((GP, 1), lambda g: (0, 0)),             # whh
            ],
            out_specs=pl.BlockSpec((1, 1, tb), lambda g: (g, 0, 0)),
            scratch_shapes=[pltpu.VMEM((T, GP, tb), jnp.float32)],
        ),
        compiler_params=pltpu.CompilerParams(
            dimension_semantics=("parallel",),   # batch tiles -> 2 TCs on v7x
        ),
        cost_estimate=cost,
    )(xt, wlt, bl_c, wiht_p, bg_p, whh_p)
    return out.reshape(B)  # matches `.squeeze()` -> (B,)


def sscl_reference(x, wl, bl, wih, bg, whh):
    """Pure-JAX reference mirroring the PyTorch forward (eval mode).

    Uses the same bf16-input / f32-accumulate path as the kernel so the
    comparison isolates kernel correctness rather than dtype rounding.
    """
    B, T, EF = x.shape
    conv = jnp.dot(x.reshape(B * T, EF).astype(jnp.bfloat16),
                   wl.astype(jnp.bfloat16),
                   preferred_element_type=jnp.float32) + bl
    conv = jnp.maximum(conv, 0.0)
    gates = (jnp.dot(conv, wih, preferred_element_type=jnp.float32)
             + bg).reshape(B, T, 4)
    h = jnp.zeros((B, 1), jnp.float32)
    c = jnp.zeros((B, 1), jnp.float32)
    for t in range(T):
        g = gates[:, t, :] + h * whh
        i_g = jax.nn.sigmoid(g[:, 0:1])
        f_g = jax.nn.sigmoid(g[:, 1:2])
        g_g = jnp.tanh(g[:, 2:3])
        o_g = jax.nn.sigmoid(g[:, 3:4])
        c = f_g * c + i_g * g_g
        h = o_g * jnp.tanh(c)
    return jax.nn.sigmoid(h)[:, 0]


def init_params(key, embedding_size, filter_size, number_filters):
    """Deterministic synthetic parameter init (shapes match nn.Linear / nn.LSTM)."""
    ef = embedding_size * filter_size
    k = jax.random.split(key, 6)
    lin_scale = 1.0 / jnp.sqrt(jnp.float32(ef))
    lstm_scale = 1.0  # hidden size 1 -> 1/sqrt(1)
    wl = jax.random.uniform(k[0], (ef, number_filters), jnp.float32,
                            -lin_scale, lin_scale)
    bl = jax.random.uniform(k[1], (1, number_filters), jnp.float32,
                            -lin_scale, lin_scale)
    wih = jax.random.uniform(k[2], (number_filters, 4), jnp.float32,
                             -lstm_scale, lstm_scale)
    b_ih = jax.random.uniform(k[3], (1, 4), jnp.float32, -lstm_scale, lstm_scale)
    b_hh = jax.random.uniform(k[4], (1, 4), jnp.float32, -lstm_scale, lstm_scale)
    whh = jax.random.uniform(k[5], (1, 4), jnp.float32, -lstm_scale, lstm_scale)
    return wl, bl, wih, b_ih + b_hh, whh


if __name__ == "__main__":
    # Small shapes consistent with the module: seq=8, embeddingSize=32,
    # filterSize=5 (-> feature dim 160), numberFilters=32; batch=256 so the
    # default tb=128 exercises two pipelined / megacore-parallel grid steps.
    B, T = 256, 8
    embedding_size, filter_size, number_filters = 32, 5, 32

    key = jax.random.PRNGKey(0)
    kx, kp = jax.random.split(key)
    x = jax.random.normal(kx, (B, T, embedding_size * filter_size), jnp.float32)
    wl, bl, wih, bg, whh = init_params(kp, embedding_size, filter_size,
                                       number_filters)

    out = jax.block_until_ready(sscl_forward(x, wl, bl, wih, bg, whh))
    ref = sscl_reference(x, wl, bl, wih, bg, whh)

    assert out.shape == (B,)
    assert jnp.allclose(out, ref, rtol=2e-3, atol=2e-3), (out, ref)
    print("KERNEL_OK")
</pallas_src>

<mosaic_0001>
module attributes {stable_mosaic.version = 11 : i64} {
  func.func @sscl_kernel(%arg0: i32, %arg1: memref<1x160x1024xbf16, #tpu.memory_space<vmem>>, %arg2: memref<32x160xbf16, #tpu.memory_space<vmem>>, %arg3: memref<32x1xf32, #tpu.memory_space<vmem>>, %arg4: memref<8x32xf32, #tpu.memory_space<vmem>>, %arg5: memref<8x1xf32, #tpu.memory_space<vmem>>, %arg6: memref<8x1xf32, #tpu.memory_space<vmem>>, %arg7: memref<1x1x128xf32, #tpu.memory_space<vmem>>, %arg8: memref<8x8x128xf32, #tpu.memory_space<vmem>>) attributes {dimension_semantics = [#tpu.dimension_semantics<parallel>], iteration_bounds = array<i64: 2>, scalar_prefetch = 0 : i64, scratch_operands = 1 : i64, tpu.core_type = #tpu.core_type<tc>, window_params = [{transform_indices = @transform_0, window_bounds = array<i64: 1, 160, 1024>}, {pipeline_mode = #tpu.pipeline_mode<synchronous>, transform_indices = @transform_1, window_bounds = array<i64: 32, 160>}, {pipeline_mode = #tpu.pipeline_mode<synchronous>, transform_indices = @transform_2, window_bounds = array<i64: 32, 1>}, {pipeline_mode = #tpu.pipeline_mode<synchronous>, transform_indices = @transform_3, window_bounds = array<i64: 8, 32>}, {pipeline_mode = #tpu.pipeline_mode<synchronous>, transform_indices = @transform_4, window_bounds = array<i64: 8, 1>}, {pipeline_mode = #tpu.pipeline_mode<synchronous>, transform_indices = @transform_5, window_bounds = array<i64: 8, 1>}, {transform_indices = @transform_6, window_bounds = array<i64: 1, 1, 128>}]} {
    %c0 = arith.constant 0 : index
    %c0_0 = arith.constant 0 : index
    %0 = vector.load %arg2[%c0, %c0_0] : memref<32x160xbf16, #tpu.memory_space<vmem>>, vector<32x160xbf16>
    %c0_1 = arith.constant 0 : index
    %c0_2 = arith.constant 0 : index
    %c0_3 = arith.constant 0 : index
    %1 = vector.load %arg1[%c0_1, %c0_2, %c0_3] : memref<1x160x1024xbf16, #tpu.memory_space<vmem>>, vector<1x160x1024xbf16>
    %2 = vector.shape_cast %1 : vector<1x160x1024xbf16> to vector<160x1024xbf16>
    %cst = arith.constant dense<0.000000e+00> : vector<32x1024xf32>
    %3 = tpu.matmul %0, %2, %cst {dimension_numbers = #tpu.dot_dimension_numbers<[1], [0], [0], [1], [0, 0, 1, 1], [], []>} : vector<32x160xbf16>, vector<160x1024xbf16>, vector<32x1024xf32> -> vector<32x1024xf32>
    %c0_4 = arith.constant 0 : index
    %c0_5 = arith.constant 0 : index
    %4 = vector.load %arg3[%c0_4, %c0_5] : memref<32x1xf32, #tpu.memory_space<vmem>>, vector<32x1xf32>
    %5 = vector.broadcast %4 : vector<32x1xf32> to vector<32x1024xf32>
    %6 = arith.addf %3, %5 : vector<32x1024xf32>
    %cst_6 = arith.constant 0.000000e+00 : f32
    %7 = vector.broadcast %cst_6 : f32 to vector<32x1024xf32>
    %8 = arith.maximumf %6, %7 : vector<32x1024xf32>
    %c0_7 = arith.constant 0 : index
    %c0_8 = arith.constant 0 : index
    %9 = vector.load %arg4[%c0_7, %c0_8] : memref<8x32xf32, #tpu.memory_space<vmem>>, vector<8x32xf32>
    %cst_9 = arith.constant dense<0.000000e+00> : vector<8x1024xf32>
    %10 = tpu.matmul %9, %8, %cst_9 {dimension_numbers = #tpu.dot_dimension_numbers<[1], [0], [0], [1], [0, 0, 1, 1], [], []>} : vector<8x32xf32>, vector<32x1024xf32>, vector<8x1024xf32> -> vector<8x1024xf32>
    %c0_10 = arith.constant 0 : index
    %c0_11 = arith.constant 0 : index
    %11 = vector.load %arg5[%c0_10, %c0_11] : memref<8x1xf32, #tpu.memory_space<vmem>>, vector<8x1xf32>
    %12 = vector.broadcast %11 : vector<8x1xf32> to vector<8x1024xf32>
    %13 = arith.addf %10, %12 : vector<8x1024xf32>
    %14 = vector.extract_strided_slice %13 {offsets = [0, 0], sizes = [8, 128], strides = [1, 1]} : vector<8x1024xf32> to vector<8x128xf32>
    %c0_12 = arith.constant 0 : index
    %c0_13 = arith.constant 0 : index
    %c0_14 = arith.constant 0 : index
    %15 = vector.load %arg8[%c0_12, %c0_13, %c0_14] : memref<8x8x128xf32, #tpu.memory_space<vmem>>, vector<1x8x128xf32>
    %16 = vector.shape_cast %15 : vector<1x8x128xf32> to vector<8x128xf32>
    %17 = vector.shape_cast %14 : vector<8x128xf32> to vector<1x8x128xf32>
    tpu.vector_store %arg8[%c0_12, %c0_13, %c0_14], %17 {strides = array<i32>} : memref<8x8x128xf32, #tpu.memory_space<vmem>>, vector<1x8x128xf32>,
    %18 = vector.extract_strided_slice %13 {offsets = [0, 128], sizes = [8, 128], strides = [1, 1]} : vector<8x1024xf32> to vector<8x128xf32>
    %c1 = arith.constant 1 : index
    %c0_15 = arith.constant 0 : index
    %c0_16 = arith.constant 0 : index
    %19 = vector.load %arg8[%c1, %c0_15, %c0_16] : memref<8x8x128xf32, #tpu.memory_space<vmem>>, vector<1x8x128xf32>
    %20 = vector.shape_cast %19 : vector<1x8x128xf32> to vector<8x128xf32>
    %21 = vector.shape_cast %18 : vector<8x128xf32> to vector<1x8x128xf32>
    tpu.vector_store %arg8[%c1, %c0_15, %c0_16], %21 {strides = array<i32>} : memref<8x8x128xf32, #tpu.memory_space<vmem>>, vector<1x8x128xf32>,
    %22 = vector.extract_strided_slice %13 {offsets = [0, 256], sizes = [8, 128], strides = [1, 1]} : vector<8x1024xf32> to vector<8x128xf32>
    %c2 = arith.constant 2 : index
    %c0_17 = arith.constant 0 : index
    %c0_18 = arith.constant 0 : index
    %23 = vector.load %arg8[%c2, %c0_17, %c0_18] : memref<8x8x128xf32, #tpu.memory_space<vmem>>, vector<1x8x128xf32>
    %24 = vector.shape_cast %23 : vector<1x8x128xf32> to vector<8x128xf32>
    %25 = vector.shape_cast %22 : vector<8x128xf32> to vector<1x8x128xf32>
    tpu.vector_store %arg8[%c2, %c0_17, %c0_18], %25 {strides = array<i32>} : memref<8x8x128xf32, #tpu.memory_space<vmem>>, vector<1x8x128xf32>,
    %26 = vector.extract_strided_slice %13 {offsets = [0, 384], sizes = [8, 128], strides = [1, 1]} : vector<8x1024xf32> to vector<8x128xf32>
    %c3 = arith.constant 3 : index
    %c0_19 = arith.constant 0 : index
    %c0_20 = arith.constant 0 : index
    %27 = vector.load %arg8[%c3, %c0_19, %c0_20] : memref<8x8x128xf32, #tpu.memory_space<vmem>>, vector<1x8x128xf32>
    %28 = vector.shape_cast %27 : vector<1x8x128xf32> to vector<8x128xf32>
    %29 = vector.shape_cast %26 : vector<8x128xf32> to vector<1x8x128xf32>
    tpu.vector_store %arg8[%c3, %c0_19, %c0_20], %29 {strides = array<i32>} : memref<8x8x128xf32, #tpu.memory_space<vmem>>, vector<1x8x128xf32>,
    %30 = vector.extract_strided_slice %13 {offsets = [0, 512], sizes = [8, 128], strides = [1, 1]} : vector<8x1024xf32> to vector<8x128xf32>
    %c4 = arith.constant 4 : index
    %c0_21 = arith.constant 0 : index
    %c0_22 = arith.constant 0 : index
    %31 = vector.load %arg8[%c4, %c0_21, %c0_22] : memref<8x8x128xf32, #tpu.memory_space<vmem>>, vector<1x8x128xf32>
    %32 = vector.shape_cast %31 : vector<1x8x128xf32> to vector<8x128xf32>
    %33 = vector.shape_cast %30 : vector<8x128xf32> to vector<1x8x128xf32>
    tpu.vector_store %arg8[%c4, %c0_21, %c0_22], %33 {strides = array<i32>} : memref<8x8x128xf32, #tpu.memory_space<vmem>>, vector<1x8x128xf32>,
    %34 = vector.extract_strided_slice %13 {offsets = [0, 640], sizes = [8, 128], strides = [1, 1]} : vector<8x1024xf32> to vector<8x128xf32>
    %c5 = arith.constant 5 : index
    %c0_23 = arith.constant 0 : index
    %c0_24 = arith.constant 0 : index
    %35 = vector.load %arg8[%c5, %c0_23, %c0_24] : memref<8x8x128xf32, #tpu.memory_space<vmem>>, vector<1x8x128xf32>
    %36 = vector.shape_cast %35 : vector<1x8x128xf32> to vector<8x128xf32>
    %37 = vector.shape_cast %34 : vector<8x128xf32> to vector<1x8x128xf32>
    tpu.vector_store %arg8[%c5, %c0_23, %c0_24], %37 {strides = array<i32>} : memref<8x8x128xf32, #tpu.memory_space<vmem>>, vector<1x8x128xf32>,
    %38 = vector.extract_strided_slice %13 {offsets = [0, 768], sizes = [8, 128], strides = [1, 1]} : vector<8x1024xf32> to vector<8x128xf32>
    %c6 = arith.constant 6 : index
    %c0_25 = arith.constant 0 : index
    %c0_26 = arith.constant 0 : index
    %39 = vector.load %arg8[%c6, %c0_25, %c0_26] : memref<8x8x128xf32, #tpu.memory_space<vmem>>, vector<1x8x128xf32>
    %40 = vector.shape_cast %39 : vector<1x8x128xf32> to vector<8x128xf32>
    %41 = vector.shape_cast %38 : vector<8x128xf32> to vector<1x8x128xf32>
    tpu.vector_store %arg8[%c6, %c0_25, %c0_26], %41 {strides = array<i32>} : memref<8x8x128xf32, #tpu.memory_space<vmem>>, vector<1x8x128xf32>,
    %42 = vector.extract_strided_slice %13 {offsets = [0, 896], sizes = [8, 128], strides = [1, 1]} : vector<8x1024xf32> to vector<8x128xf32>
    %c7 = arith.constant 7 : index
    %c0_27 = arith.constant 0 : index
    %c0_28 = arith.constant 0 : index
    %43 = vector.load %arg8[%c7, %c0_27, %c0_28] : memref<8x8x128xf32, #tpu.memory_space<vmem>>, vector<1x8x128xf32>
    %44 = vector.shape_cast %43 : vector<1x8x128xf32> to vector<8x128xf32>
    %45 = vector.shape_cast %42 : vector<8x128xf32> to vector<1x8x128xf32>
    tpu.vector_store %arg8[%c7, %c0_27, %c0_28], %45 {strides = array<i32>} : memref<8x8x128xf32, #tpu.memory_space<vmem>>, vector<1x8x128xf32>,
    %c0_29 = arith.constant 0 : index
    %c0_30 = arith.constant 0 : index
    %46 = vector.load %arg6[%c0_29, %c0_30] : memref<8x1xf32, #tpu.memory_space<vmem>>, vector<8x1xf32>
    %47 = tpu.iota {dimensions = array<i32: 0>} : vector<8x128xi32>
    %c2_i32 = arith.constant 2 : i32
    %48 = vector.broadcast %c2_i32 : i32 to vector<8x128xi32>
    %49 = arith.cmpi eq, %47, %48 : vector<8x128xi32>
    %cst_31 = arith.constant 0.000000e+00 : f32
    %50 = vector.broadcast %cst_31 : f32 to vector<1x128xf32>
    %cst_32 = arith.constant 0.000000e+00 : f32
    %51 = vector.broadcast %cst_32 : f32 to vector<1x128xf32>
    %c0_i32 = arith.constant 0 : i32
    %52 = arith.index_cast %c0_i32 : i32 to index
    %c0_33 = arith.constant 0 : index
    %c0_34 = arith.constant 0 : index
    %53 = vector.load %arg8[%52, %c0_33, %c0_34] : memref<8x8x128xf32, #tpu.memory_space<vmem>>, vector<1x8x128xf32>
    %54 = vector.shape_cast %53 : vector<1x8x128xf32> to vector<8x128xf32>
    %55 = vector.broadcast %50 : vector<1x128xf32> to vector<8x128xf32>
    %56 = vector.broadcast %46 : vector<8x1xf32> to vector<8x128xf32>
    %57 = arith.mulf %55, %56 : vector<8x128xf32>
    %58 = arith.addf %54, %57 : vector<8x128xf32>
    %59 = arith.negf %58 : vector<8x128xf32>
    %60 = math.exp %59 : vector<8x128xf32>
    %cst_35 = arith.constant 1.000000e+00 : f32
    %61 = vector.broadcast %cst_35 : f32 to vector<8x128xf32>
    %62 = arith.addf %61, %60 : vector<8x128xf32>
    %63 = arith.divf %61, %62 : vector<8x128xf32>
    %cst_36 = arith.constant 2.000000e+00 : f32
    %64 = vector.broadcast %cst_36 : f32 to vector<8x128xf32>
    %65 = arith.mulf %64, %63 : vector<8x128xf32>
    %cst_37 = arith.constant 1.000000e+00 : f32
    %66 = vector.broadcast %cst_37 : f32 to vector<8x128xf32>
    %67 = arith.subf %65, %66 : vector<8x128xf32>
    %68 = arith.select %49, %67, %63 : vector<8x128xi1>, vector<8x128xf32>
    %69 = vector.extract_strided_slice %68 {offsets = [0, 0], sizes = [1, 128], strides = [1, 1]} : vector<8x128xf32> to vector<1x128xf32>
    %70 = vector.extract_strided_slice %68 {offsets = [1, 0], sizes = [1, 128], strides = [1, 1]} : vector<8x128xf32> to vector<1x128xf32>
    %71 = vector.extract_strided_slice %68 {offsets = [2, 0], sizes = [1, 128], strides = [1, 1]} : vector<8x128xf32> to vector<1x128xf32>
    %72 = vector.extract_strided_slice %68 {offsets = [3, 0], sizes = [1, 128], strides = [1, 1]} : vector<8x128xf32> to vector<1x128xf32>
    %73 = arith.mulf %70, %51 : vector<1x128xf32>
    %74 = arith.mulf %69, %71 : vector<1x128xf32>
    %75 = arith.addf %73, %74 : vector<1x128xf32>
    %76 = math.tanh %75 : vector<1x128xf32>
    %77 = arith.mulf %72, %76 : vector<1x128xf32>
    %c1_i32 = arith.constant 1 : i32
    %78 = arith.index_cast %c1_i32 : i32 to index
    %c0_38 = arith.constant 0 : index
    %c0_39 = arith.constant 0 : index
    %79 = vector.load %arg8[%78, %c0_38, %c0_39] : memref<8x8x128xf32, #tpu.memory_space<vmem>>, vector<1x8x128xf32>
    %80 = vector.shape_cast %79 : vector<1x8x128xf32> to vector<8x128xf32>
    %81 = vector.broadcast %77 : vector<1x128xf32> to vector<8x128xf32>
    %82 = vector.broadcast %46 : vector<8x1xf32> to vector<8x128xf32>
    %83 = arith.mulf %81, %82 : vector<8x128xf32>
    %84 = arith.addf %80, %83 : vector<8x128xf32>
    %85 = arith.negf %84 : vector<8x128xf32>
    %86 = math.exp %85 : vector<8x128xf32>
    %cst_40 = arith.constant 1.000000e+00 : f32
    %87 = vector.broadcast %cst_40 : f32 to vector<8x128xf32>
    %88 = arith.addf %87, %86 : vector<8x128xf32>
    %89 = arith.divf %87, %88 : vector<8x128xf32>
    %cst_41 = arith.constant 2.000000e+00 : f32
    %90 = vector.broadcast %cst_41 : f32 to vector<8x128xf32>
    %91 = arith.mulf %90, %89 : vector<8x128xf32>
    %cst_42 = arith.constant 1.000000e+00 : f32
    %92 = vector.broadcast %cst_42 : f32 to vector<8x128xf32>
    %93 = arith.subf %91, %92 : vector<8x128xf32>
    %94 = arith.select %49, %93, %89 : vector<8x128xi1>, vector<8x128xf32>
    %95 = vector.extract_strided_slice %94 {offsets = [0, 0], sizes = [1, 128], strides = [1, 1]} : vector<8x128xf32> to vector<1x128xf32>
    %96 = vector.extract_strided_slice %94 {offsets = [1, 0], sizes = [1, 128], strides = [1, 1]} : vector<8x128xf32> to vector<1x128xf32>
    %97 = vector.extract_strided_slice %94 {offsets = [2, 0], sizes = [1, 128], strides = [1, 1]} : vector<8x128xf32> to vector<1x128xf32>
    %98 = vector.extract_strided_slice %94 {offsets = [3, 0], sizes = [1, 128], strides = [1, 1]} : vector<8x128xf32> to vector<1x128xf32>
    %99 = arith.mulf %96, %75 : vector<1x128xf32>
    %100 = arith.mulf %95, %97 : vector<1x128xf32>
    %101 = arith.addf %99, %100 : vector<1x128xf32>
    %102 = math.tanh %101 : vector<1x128xf32>
    %103 = arith.mulf %98, %102 : vector<1x128xf32>
    %c2_i32_43 = arith.constant 2 : i32
    %104 = arith.index_cast %c2_i32_43 : i32 to index
    %c0_44 = arith.constant 0 : index
    %c0_45 = arith.constant 0 : index
    %105 = vector.load %arg8[%104, %c0_44, %c0_45] : memref<8x8x128xf32, #tpu.memory_space<vmem>>, vector<1x8x128xf32>
    %106 = vector.shape_cast %105 : vector<1x8x128xf32> to vector<8x128xf32>
    %107 = vector.broadcast %103 : vector<1x128xf32> to vector<8x128xf32>
    %108 = vector.broadcast %46 : vector<8x1xf32> to vector<8x128xf32>
    %109 = arith.mulf %107, %108 : vector<8x128xf32>
    %110 = arith.addf %106, %109 : vector<8x128xf32>
    %111 = arith.negf %110 : vector<8x128xf32>
    %112 = math.exp %111 : vector<8x128xf32>
    %cst_46 = arith.constant 1.000000e+00 : f32
    %113 = vector.broadcast %cst_46 : f32 to vector<8x128xf32>
    %114 = arith.addf %113, %112 : vector<8x128xf32>
    %115 = arith.divf %113, %114 : vector<8x128xf32>
    %cst_47 = arith.constant 2.000000e+00 : f32
    %116 = vector.broadcast %cst_47 : f32 to vector<8x128xf32>
    %117 = arith.mulf %116, %115 : vector<8x128xf32>
    %cst_48 = arith.constant 1.000000e+00 : f32
    %118 = vector.broadcast %cst_48 : f32 to vector<8x128xf32>
    %119 = arith.subf %117, %118 : vector<8x128xf32>
    %120 = arith.select %49, %119, %115 : vector<8x128xi1>, vector<8x128xf32>
    %121 = vector.extract_strided_slice %120 {offsets = [0, 0], sizes = [1, 128], strides = [1, 1]} : vector<8x128xf32> to vector<1x128xf32>
    %122 = vector.extract_strided_slice %120 {offsets = [1, 0], sizes = [1, 128], strides = [1, 1]} : vector<8x128xf32> to vector<1x128xf32>
    %123 = vector.extract_strided_slice %120 {offsets = [2, 0], sizes = [1, 128], strides = [1, 1]} : vector<8x128xf32> to vector<1x128xf32>
    %124 = vector.extract_strided_slice %120 {offsets = [3, 0], sizes = [1, 128], strides = [1, 1]} : vector<8x128xf32> to vector<1x128xf32>
    %125 = arith.mulf %122, %101 : vector<1x128xf32>
    %126 = arith.mulf %121, %123 : vector<1x128xf32>
    %127 = arith.addf %125, %126 : vector<1x128xf32>
    %128 = math.tanh %127 : vector<1x128xf32>
    %129 = arith.mulf %124, %128 : vector<1x128xf32>
    %c3_i32 = arith.constant 3 : i32
    %130 = arith.index_cast %c3_i32 : i32 to index
    %c0_49 = arith.constant 0 : index
    %c0_50 = arith.constant 0 : index
    %131 = vector.load %arg8[%130, %c0_49, %c0_50] : memref<8x8x128xf32, #tpu.memory_space<vmem>>, vector<1x8x128xf32>
    %132 = vector.shape_cast %131 : vector<1x8x128xf32> to vector<8x128xf32>
    %133 = vector.broadcast %129 : vector<1x128xf32> to vector<8x128xf32>
    %134 = vector.broadcast %46 : vector<8x1xf32> to vector<8x128xf32>
    %135 = arith.mulf %133, %134 : vector<8x128xf32>
    %136 = arith.addf %132, %135 : vector<8x128xf32>
    %137 = arith.negf %136 : vector<8x128xf32>
    %138 = math.exp %137 : vector<8x128xf32>
    %cst_51 = arith.constant 1.000000e+00 : f32
    %139 = vector.broadcast %cst_51 : f32 to vector<8x128xf32>
    %140 = arith.addf %139, %138 : vector<8x128xf32>
    %141 = arith.divf %139, %140 : vector<8x128xf32>
    %cst_52 = arith.constant 2.000000e+00 : f32
    %142 = vector.broadcast %cst_52 : f32 to vector<8x128xf32>
    %143 = arith.mulf %142, %141 : vector<8x128xf32>
    %cst_53 = arith.constant 1.000000e+00 : f32
    %144 = vector.broadcast %cst_53 : f32 to vector<8x128xf32>
    %145 = arith.subf %143, %144 : vector<8x128xf32>
    %146 = arith.select %49, %145, %141 : vector<8x128xi1>, vector<8x128xf32>
    %147 = vector.extract_strided_slice %146 {offsets = [0, 0], sizes = [1, 128], strides = [1, 1]} : vector<8x128xf32> to vector<1x128xf32>
    %148 = vector.extract_strided_slice %146 {offsets = [1, 0], sizes = [1, 128], strides = [1, 1]} : vector<8x128xf32> to vector<1x128xf32>
    %149 = vector.extract_strided_slice %146 {offsets = [2, 0], sizes = [1, 128], strides = [1, 1]} : vector<8x128xf32> to vector<1x128xf32>
    %150 = vector.extract_strided_slice %146 {offsets = [3, 0], sizes = [1, 128], strides = [1, 1]} : vector<8x128xf32> to vector<1x128xf32>
    %151 = arith.mulf %148, %127 : vector<1x128xf32>
    %152 = arith.mulf %147, %149 : vector<1x128xf32>
    %153 = arith.addf %151, %152 : vector<1x128xf32>
    %154 = math.tanh %153 : vector<1x128xf32>
    %155 = arith.mulf %150, %154 : vector<1x128xf32>
    %c4_i32 = arith.constant 4 : i32
    %156 = arith.index_cast %c4_i32 : i32 to index
    %c0_54 = arith.constant 0 : index
    %c0_55 = arith.constant 0 : index
    %157 = vector.load %arg8[%156, %c0_54, %c0_55] : memref<8x8x128xf32, #tpu.memory_space<vmem>>, vector<1x8x128xf32>
    %158 = vector.shape_cast %157 : vector<1x8x128xf32> to vector<8x128xf32>
    %159 = vector.broadcast %155 : vector<1x128xf32> to vector<8x128xf32>
    %160 = vector.broadcast %46 : vector<8x1xf32> to vector<8x128xf32>
    %161 = arith.mulf %159, %160 : vector<8x128xf32>
    %162 = arith.addf %158, %161 : vector<8x128xf32>
    %163 = arith.negf %162 : vector<8x128xf32>
    %164 = math.exp %163 : vector<8x128xf32>
    %cst_56 = arith.constant 1.000000e+00 : f32
    %165 = vector.broadcast %cst_56 : f32 to vector<8x128xf32>
    %166 = arith.addf %165, %164 : vector<8x128xf32>
    %167 = arith.divf %165, %166 : vector<8x128xf32>
    %cst_57 = arith.constant 2.000000e+00 : f32
    %168 = vector.broadcast %cst_57 : f32 to vector<8x128xf32>
    %169 = arith.mulf %168, %167 : vector<8x128xf32>
    %cst_58 = arith.constant 1.000000e+00 : f32
    %170 = vector.broadcast %cst_58 : f32 to vector<8x128xf32>
    %171 = arith.subf %169, %170 : vector<8x128xf32>
    %172 = arith.select %49, %171, %167 : vector<8x128xi1>, vector<8x128xf32>
    %173 = vector.extract_strided_slice %172 {offsets = [0, 0], sizes = [1, 128], strides = [1, 1]} : vector<8x128xf32> to vector<1x128xf32>
    %174 = vector.extract_strided_slice %172 {offsets = [1, 0], sizes = [1, 128], strides = [1, 1]} : vector<8x128xf32> to vector<1x128xf32>
    %175 = vector.extract_strided_slice %172 {offsets = [2, 0], sizes = [1, 128], strides = [1, 1]} : vector<8x128xf32> to vector<1x128xf32>
    %176 = vector.extract_strided_slice %172 {offsets = [3, 0], sizes = [1, 128], strides = [1, 1]} : vector<8x128xf32> to vector<1x128xf32>
    %177 = arith.mulf %174, %153 : vector<1x128xf32>
    %178 = arith.mulf %173, %175 : vector<1x128xf32>
    %179 = arith.addf %177, %178 : vector<1x128xf32>
    %180 = math.tanh %179 : vector<1x128xf32>
    %181 = arith.mulf %176, %180 : vector<1x128xf32>
    %c5_i32 = arith.constant 5 : i32
    %182 = arith.index_cast %c5_i32 : i32 to index
    %c0_59 = arith.constant 0 : index
    %c0_60 = arith.constant 0 : index
    %183 = vector.load %arg8[%182, %c0_59, %c0_60] : memref<8x8x128xf32, #tpu.memory_space<vmem>>, vector<1x8x128xf32>
    %184 = vector.shape_cast %183 : vector<1x8x128xf32> to vector<8x128xf32>
    %185 = vector.broadcast %181 : vector<1x128xf32> to vector<8x128xf32>
    %186 = vector.broadcast %46 : vector<8x1xf32> to vector<8x128xf32>
    %187 = arith.mulf %185, %186 : vector<8x128xf32>
    %188 = arith.addf %184, %187 : vector<8x128xf32>
    %189 = arith.negf %188 : vector<8x128xf32>
    %190 = math.exp %189 : vector<8x128xf32>
    %cst_61 = arith.constant 1.000000e+00 : f32
    %191 = vector.broadcast %cst_61 : f32 to vector<8x128xf32>
    %192 = arith.addf %191, %190 : vector<8x128xf32>
    %193 = arith.divf %191, %192 : vector<8x128xf32>
    %cst_62 = arith.constant 2.000000e+00 : f32
    %194 = vector.broadcast %cst_62 : f32 to vector<8x128xf32>
    %195 = arith.mulf %194, %193 : vector<8x128xf32>
    %cst_63 = arith.constant 1.000000e+00 : f32
    %196 = vector.broadcast %cst_63 : f32 to vector<8x128xf32>
    %197 = arith.subf %195, %196 : vector<8x128xf32>
    %198 = arith.select %49, %197, %193 : vector<8x128xi1>, vector<8x128xf32>
    %199 = vector.extract_strided_slice %198 {offsets = [0, 0], sizes = [1, 128], strides = [1, 1]} : vector<8x128xf32> to vector<1x128xf32>
    %200 = vector.extract_strided_slice %198 {offsets = [1, 0], sizes = [1, 128], strides = [1, 1]} : vector<8x128xf32> to vector<1x128xf32>
    %201 = vector.extract_strided_slice %198 {offsets = [2, 0], sizes = [1, 128], strides = [1, 1]} : vector<8x128xf32> to vector<1x128xf32>
    %202 = vector.extract_strided_slice %198 {offsets = [3, 0], sizes = [1, 128], strides = [1, 1]} : vector<8x128xf32> to vector<1x128xf32>
    %203 = arith.mulf %200, %179 : vector<1x128xf32>
    %204 = arith.mulf %199, %201 : vector<1x128xf32>
    %205 = arith.addf %203, %204 : vector<1x128xf32>
    %206 = math.tanh %205 : vector<1x128xf32>
    %207 = arith.mulf %202, %206 : vector<1x128xf32>
    %c6_i32 = arith.constant 6 : i32
    %208 = arith.index_cast %c6_i32 : i32 to index
    %c0_64 = arith.constant 0 : index
    %c0_65 = arith.constant 0 : index
    %209 = vector.load %arg8[%208, %c0_64, %c0_65] : memref<8x8x128xf32, #tpu.memory_space<vmem>>, vector<1x8x128xf32>
    %210 = vector.shape_cast %209 : vector<1x8x128xf32> to vector<8x128xf32>
    %211 = vector.broadcast %207 : vector<1x128xf32> to vector<8x128xf32>
    %212 = vector.broadcast %46 : vector<8x1xf32> to vector<8x128xf32>
    %213 = arith.mulf %211, %212 : vector<8x128xf32>
    %214 = arith.addf %210, %213 : vector<8x128xf32>
    %215 = arith.negf %214 : vector<8x128xf32>
    %216 = math.exp %215 : vector<8x128xf32>
    %cst_66 = arith.constant 1.000000e+00 : f32
    %217 = vector.broadcast %cst_66 : f32 to vector<8x128xf32>
    %218 = arith.addf %217, %216 : vector<8x128xf32>
    %219 = arith.divf %217, %218 : vector<8x128xf32>
    %cst_67 = arith.constant 2.000000e+00 : f32
    %220 = vector.broadcast %cst_67 : f32 to vector<8x128xf32>
    %221 = arith.mulf %220, %219 : vector<8x128xf32>
    %cst_68 = arith.constant 1.000000e+00 : f32
    %222 = vector.broadcast %cst_68 : f32 to vector<8x128xf32>
    %223 = arith.subf %221, %222 : vector<8x128xf32>
    %224 = arith.select %49, %223, %219 : vector<8x128xi1>, vector<8x128xf32>
    %225 = vector.extract_strided_slice %224 {offsets = [0, 0], sizes = [1, 128], strides = [1, 1]} : vector<8x128xf32> to vector<1x128xf32>
    %226 = vector.extract_strided_slice %224 {offsets = [1, 0], sizes = [1, 128], strides = [1, 1]} : vector<8x128xf32> to vector<1x128xf32>
    %227 = vector.extract_strided_slice %224 {offsets = [2, 0], sizes = [1, 128], strides = [1, 1]} : vector<8x128xf32> to vector<1x128xf32>
    %228 = vector.extract_strided_slice %224 {offsets = [3, 0], sizes = [1, 128], strides = [1, 1]} : vector<8x128xf32> to vector<1x128xf32>
    %229 = arith.mulf %226, %205 : vector<1x128xf32>
    %230 = arith.mulf %225, %227 : vector<1x128xf32>
    %231 = arith.addf %229, %230 : vector<1x128xf32>
    %232 = math.tanh %231 : vector<1x128xf32>
    %233 = arith.mulf %228, %232 : vector<1x128xf32>
    %c7_i32 = arith.constant 7 : i32
    %234 = arith.index_cast %c7_i32 : i32 to index
    %c0_69 = arith.constant 0 : index
    %c0_70 = arith.constant 0 : index
    %235 = vector.load %arg8[%234, %c0_69, %c0_70] : memref<8x8x128xf32, #tpu.memory_space<vmem>>, vector<1x8x128xf32>
    %236 = vector.shape_cast %235 : vector<1x8x128xf32> to vector<8x128xf32>
    %237 = vector.broadcast %233 : vector<1x128xf32> to vector<8x128xf32>
    %238 = vector.broadcast %46 : vector<8x1xf32> to vector<8x128xf32>
    %239 = arith.mulf %237, %238 : vector<8x128xf32>
    %240 = arith.addf %236, %239 : vector<8x128xf32>
    %241 = arith.negf %240 : vector<8x128xf32>
    %242 = math.exp %241 : vector<8x128xf32>
    %cst_71 = arith.constant 1.000000e+00 : f32
    %243 = vector.broadcast %cst_71 : f32 to vector<8x128xf32>
    %244 = arith.addf %243, %242 : vector<8x128xf32>
    %245 = arith.divf %243, %244 : vector<8x128xf32>
    %cst_72 = arith.constant 2.000000e+00 : f32
    %246 = vector.broadcast %cst_72 : f32 to vector<8x128xf32>
    %247 = arith.mulf %246, %245 : vector<8x128xf32>
    %cst_73 = arith.constant 1.000000e+00 : f32
    %248 = vector.broadcast %cst_73 : f32 to vector<8x128xf32>
    %249 = arith.subf %247, %248 : vector<8x128xf32>
    %250 = arith.select %49, %249, %245 : vector<8x128xi1>, vector<8x128xf32>
    %251 = vector.extract_strided_slice %250 {offsets = [0, 0], sizes = [1, 128], strides = [1, 1]} : vector<8x128xf32> to vector<1x128xf32>
    %252 = vector.extract_strided_slice %250 {offsets = [1, 0], sizes = [1, 128], strides = [1, 1]} : vector<8x128xf32> to vector<1x128xf32>
    %253 = vector.extract_strided_slice %250 {offsets = [2, 0], sizes = [1, 128], strides = [1, 1]} : vector<8x128xf32> to vector<1x128xf32>
    %254 = vector.extract_strided_slice %250 {offsets = [3, 0], sizes = [1, 128], strides = [1, 1]} : vector<8x128xf32> to vector<1x128xf32>
    %255 = arith.mulf %252, %231 : vector<1x128xf32>
    %256 = arith.mulf %251, %253 : vector<1x128xf32>
    %257 = arith.addf %255, %256 : vector<1x128xf32>
    %258 = math.tanh %257 : vector<1x128xf32>
    %259 = arith.mulf %254, %258 : vector<1x128xf32>
    %c8_i32 = arith.constant 8 : i32
    %260 = arith.negf %259 : vector<1x128xf32>
    %261 = math.exp %260 : vector<1x128xf32>
    %cst_74 = arith.constant 1.000000e+00 : f32
    %262 = vector.broadcast %cst_74 : f32 to vector<1x128xf32>
    %263 = arith.addf %262, %261 : vector<1x128xf32>
    %264 = arith.divf %262, %263 : vector<1x128xf32>
    %c0_75 = arith.constant 0 : index
    %c0_76 = arith.constant 0 : index
    %c0_77 = arith.constant 0 : index
    %265 = vector.load %arg7[%c0_75, %c0_76, %c0_77] : memref<1x1x128xf32, #tpu.memory_space<vmem>>, vector<1x1x128xf32>
    %266 = vector.shape_cast %265 : vector<1x1x128xf32> to vector<1x128xf32>
    %267 = vector.shape_cast %264 : vector<1x128xf32> to vector<1x1x128xf32>
    tpu.vector_store %arg7[%c0_75, %c0_76, %c0_77], %267 {strides = array<i32>} : memref<1x1x128xf32, #tpu.memory_space<vmem>>, vector<1x1x128xf32>,
    return
  }
  func.func @transform_0(%arg0: i32) -> (i32, i32, i32) {
    %c0_i32 = arith.constant 0 : i32
    %c0_i32_0 = arith.constant 0 : i32
    %c0_i32_1 = arith.constant 0 : i32
    return %arg0, %c0_i32, %c0_i32_0 : i32, i32, i32
  }
  func.func @transform_1(%arg0: i32) -> (i32, i32) {
    %c0_i32 = arith.constant 0 : i32
    %c0_i32_0 = arith.constant 0 : i32
    %c0_i32_1 = arith.constant 0 : i32
    return %c0_i32, %c0_i32_0 : i32, i32
  }
  func.func @transform_2(%arg0: i32) -> (i32, i32) {
    %c0_i32 = arith.constant 0 : i32
    %c0_i32_0 = arith.constant 0 : i32
    %c0_i32_1 = arith.constant 0 : i32
    return %c0_i32, %c0_i32_0 : i32, i32
  }
  func.func @transform_3(%arg0: i32) -> (i32, i32) {
    %c0_i32 = arith.constant 0 : i32
    %c0_i32_0 = arith.constant 0 : i32
    %c0_i32_1 = arith.constant 0 : i32
    return %c0_i32, %c0_i32_0 : i32, i32
  }
  func.func @transform_4(%arg0: i32) -> (i32, i32) {
    %c0_i32 = arith.constant 0 : i32
    %c0_i32_0 = arith.constant 0 : i32
    %c0_i32_1 = arith.constant 0 : i32
    return %c0_i32, %c0_i32_0 : i32, i32
  }
  func.func @transform_5(%arg0: i32) -> (i32, i32) {
    %c0_i32 = arith.constant 0 : i32
    %c0_i32_0 = arith.constant 0 : i32
    %c0_i32_1 = arith.constant 0 : i32
    return %c0_i32, %c0_i32_0 : i32, i32
  }
  func.func @transform_6(%arg0: i32) -> (i32, i32, i32) {
    %c0_i32 = arith.constant 0 : i32
    %c0_i32_0 = arith.constant 0 : i32
    %c0_i32_1 = arith.constant 0 : i32
    return %arg0, %c0_i32, %c0_i32_0 : i32, i32, i32
  }
}

</mosaic_0001>

<llo_original>
// kernel: sscl_forward.1
$region0: #{sscl_forward.1}
  #allocation0 [shape = 'u32[]', space=smem, size = 0x4, offset = 0x4, fixed_abs, tag = 'smem constant byte address 0x4 - core index']
  #allocation1 [shape = 'u32[144,128]{1,0:T(1,128)}', space=vmem, size = 0x12000, scoped, tag = 'internal scratch']
  #allocation2 [shape = 'f32[8,8,128]{2,1,0:T(8,128)}', space=vmem, size = 0x8000, scoped, tag = 'scratch operand']
  %s0 = inlined_call_operand.vmem [shape: bf16[2,160,1024], index: 0, kind: input, shape index: {}]
  %s1 = inlined_call_operand.vmem [shape: bf16[32,160], index: 1, kind: input, shape index: {}]
  %s2 = inlined_call_operand.vmem [shape: f32[32,1], index: 2, kind: input, shape index: {}]
  %s3 = inlined_call_operand.vmem [shape: f32[8,32], index: 3, kind: input, shape index: {}]
  %s4 = inlined_call_operand.vmem [shape: f32[8,1], index: 4, kind: input, shape index: {}]
  %s5 = inlined_call_operand.vmem [shape: f32[8,1], index: 5, kind: input, shape index: {}]
  %s6 = inlined_call_operand.hbm [shape: f32[2,1,128], index: 6, kind: output, shape index: {}]
  %s7 = sld [smem:[#allocation0]]
  $region57: #{sscl_forward.1} parent=0
    _
  %s9 = ssub.s32 1, %s7
  %s10 = scalar_select 0, %s9, %s7
  $region1: #{sscl_forward.1} parent=0
    #allocation3 [shape = 'u8[1024]{0}', space=vmem, size = 0x400, scoped, tag = 'output window, operand 0']
    #allocation4 [shape = 's32[2]{0}', space=sflag, size = 0x8, scoped, tag = 'scoped memory for sscl_forward.1']
    %11 = vsyncpa [#allocation4], 0
    %s12 = scalar_lea.sflag [#allocation4], 1
    %13 = vsyncpa %s12, 0
    loop: start=0, step=1, limit=4
    $region2: #{sscl_forward.1} parent=1 // loop_pre_header
      _
    $region3: #{sscl_forward.1} parent=1 // loop_header
      %s15 = sphi 0, %s19
      %p16 = scmp.ge.s32.totalorder %s15, 4
      %s25 = sphi 0, %s27
      %s28 = sphi 0, %s25
      %s29 = sphi 0, %s28
      %s45 = sphi 0, %s29
      %s49 = sphi 0, %s49
      %s51 = sphi 0, %s49
      %s52 = sphi 0, %s51
      %s66 = sphi 0, %s52
      %s70 = sphi 0, %s70
      %s72 = sphi 0, %s70
      %s73 = sphi 0, %s72
      %s87 = sphi 0, %s73
      %s91 = sphi 0, %s91
      %s93 = sphi 0, %s91
      %s94 = sphi 0, %s93
      %s108 = sphi 0, %s94
      %s112 = sphi 0, %s112
      %s114 = sphi 0, %s112
      %s115 = sphi 0, %s114
      %s129 = sphi 0, %s115
      %s133 = sphi 0, %s133
      %s135 = sphi 0, %s133
      %s136 = sphi 0, %s135
      %s150 = sphi 0, %s136
      %s156 = sphi 0, %s158
      %s159 = sphi 0, %s156
      %s160 = sphi 0, %s159
      %s176 = sphi 0, %s160
    $region4: #{sscl_forward.1} parent=1 // loop_header_branch
      %18 = sbr.rel (%p16) target = $region8
    $region5: #{sscl_forward.1} parent=1 // loop_body
      %s20 = ssub.s32 %s15, 1
      %s21 = ssub.s32 %s15, 2
      %s22 = sadd.s32 %s15, 1
      %s23 = ssub.s32 %s15, %s22
      %p24 = scmp.eq.s32.totalorder %s23, 0
      %s26 = sadd.s32 %s25, 1
      %s27 = scalar_select %p24, %s25, %s26
      %p30 = pneg %p24
      %p31 = scmp.eq.s32.totalorder %s15, 1
      %p32 = por %p30, %p31
      %p33 = scmp.ne.s32.totalorder %s25, %s28
      %p34 = scmp.eq.s32.totalorder %s15, 0
      %p35 = por %p33, %p34
      %p36 = scmp.ne.s32.totalorder %s25, %s28
      %p37 = scmp.eq.s32.totalorder %s20, 1
      %p38 = por %p36, %p37
      %p39 = scmp.ne.s32.totalorder %s28, %s29
      %p40 = scmp.eq.s32.totalorder %s20, 0
      %p41 = por %p39, %p40
      %p42 = scmp.ne.s32.totalorder %s28, %s29
      %p43 = scmp.eq.s32.totalorder %s21, 1
      %p44 = por %p42, %p43
      %p46 = scmp.ne.s32.totalorder %s29, %s45
      %p47 = scmp.eq.s32.totalorder %s21, 0
      %p48 = por %p46, %p47
      %s50 = sadd.s32 %s49, 1
      %p53 = scmp.eq.s32.totalorder %s15, 1
      %p54 = scmp.ne.s32.totalorder %s49, %s51
      %p55 = scmp.eq.s32.totalorder %s15, 0
      %p56 = por %p54, %p55
      %p57 = scmp.ne.s32.totalorder %s49, %s51
      %p58 = scmp.eq.s32.totalorder %s20, 1
      %p59 = por %p57, %p58
      %p60 = scmp.ne.s32.totalorder %s51, %s52
      %p61 = scmp.eq.s32.totalorder %s20, 0
      %p62 = por %p60, %p61
      %p63 = scmp.ne.s32.totalorder %s51, %s52
      %p64 = scmp.eq.s32.totalorder %s21, 1
      %p65 = por %p63, %p64
      %p67 = scmp.ne.s32.totalorder %s52, %s66
      %p68 = scmp.eq.s32.totalorder %s21, 0
      %p69 = por %p67, %p68
      %s71 = sadd.s32 %s70, 1
      %p74 = scmp.eq.s32.totalorder %s15, 1
      %p75 = scmp.ne.s32.totalorder %s70, %s72
      %p76 = scmp.eq.s32.totalorder %s15, 0
      %p77 = por %p75, %p76
      %p78 = scmp.ne.s32.totalorder %s70, %s72
      %p79 = scmp.eq.s32.totalorder %s20, 1
      %p80 = por %p78, %p79
      %p81 = scmp.ne.s32.totalorder %s72, %s73
      %p82 = scmp.eq.s32.totalorder %s20, 0
      %p83 = por %p81, %p82
      %p84 = scmp.ne.s32.totalorder %s72, %s73
      %p85 = scmp.eq.s32.totalorder %s21, 1
      %p86 = por %p84, %p85
      %p88 = scmp.ne.s32.totalorder %s73, %s87
      %p89 = scmp.eq.s32.totalorder %s21, 0
      %p90 = por %p88, %p89
      %s92 = sadd.s32 %s91, 1
      %p95 = scmp.eq.s32.totalorder %s15, 1
      %p96 = scmp.ne.s32.totalorder %s91, %s93
      %p97 = scmp.eq.s32.totalorder %s15, 0
      %p98 = por %p96, %p97
      %p99 = scmp.ne.s32.totalorder %s91, %s93
      %p100 = scmp.eq.s32.totalorder %s20, 1
      %p101 = por %p99, %p100
      %p102 = scmp.ne.s32.totalorder %s93, %s94
      %p103 = scmp.eq.s32.totalorder %s20, 0
      %p104 = por %p102, %p103
      %p105 = scmp.ne.s32.totalorder %s93, %s94
      %p106 = scmp.eq.s32.totalorder %s21, 1
      %p107 = por %p105, %p106
      %p109 = scmp.ne.s32.totalorder %s94, %s108
      %p110 = scmp.eq.s32.totalorder %s21, 0
      %p111 = por %p109, %p110
      %s113 = sadd.s32 %s112, 1
      %p116 = scmp.eq.s32.totalorder %s15, 1
      %p117 = scmp.ne.s32.totalorder %s112, %s114
      %p118 = scmp.eq.s32.totalorder %s15, 0
      %p119 = por %p117, %p118
      %p120 = scmp.ne.s32.totalorder %s112, %s114
      %p121 = scmp.eq.s32.totalorder %s20, 1
      %p122 = por %p120, %p121
      %p123 = scmp.ne.s32.totalorder %s114, %s115
      %p124 = scmp.eq.s32.totalorder %s20, 0
      %p125 = por %p123, %p124
      %p126 = scmp.ne.s32.totalorder %s114, %s115
      %p127 = scmp.eq.s32.totalorder %s21, 1
      %p128 = por %p126, %p127
      %p130 = scmp.ne.s32.totalorder %s115, %s129
      %p131 = scmp.eq.s32.totalorder %s21, 0
      %p132 = por %p130, %p131
      %s134 = sadd.s32 %s133, 1
      %p137 = scmp.eq.s32.totalorder %s15, 1
      %p138 = scmp.ne.s32.totalorder %s133, %s135
      %p139 = scmp.eq.s32.totalorder %s15, 0
      %p140 = por %p138, %p139
      %p141 = scmp.ne.s32.totalorder %s133, %s135
      %p142 = scmp.eq.s32.totalorder %s20, 1
      %p143 = por %p141, %p142
      %p144 = scmp.ne.s32.totalorder %s135, %s136
      %p145 = scmp.eq.s32.totalorder %s20, 0
      %p146 = por %p144, %p145
      %p147 = scmp.ne.s32.totalorder %s135, %s136
      %p148 = scmp.eq.s32.totalorder %s21, 1
      %p149 = por %p147, %p148
      %p151 = scmp.ne.s32.totalorder %s136, %s150
      %p152 = scmp.eq.s32.totalorder %s21, 0
      %p153 = por %p151, %p152
      %s154 = ssub.s32 %s15, %s22
      %p155 = scmp.eq.s32.totalorder %s154, 0
      %s157 = sadd.s32 %s156, 1
      %s158 = scalar_select %p155, %s156, %s157
      %p161 = pneg %p155
      %p162 = scmp.eq.s32.totalorder %s15, 1
      %p163 = por %p161, %p162
      %p164 = scmp.ne.s32.totalorder %s156, %s159
      %p165 = scmp.eq.s32.totalorder %s15, 0
      %p166 = por %p164, %p165
      %p167 = scmp.ne.s32.totalorder %s156, %s159
      %p168 = scmp.eq.s32.totalorder %s20, 1
      %p169 = por %p167, %p168
      %p170 = scmp.ne.s32.totalorder %s159, %s160
      %p171 = scmp.eq.s32.totalorder %s20, 0
      %p172 = por %p170, %p171
      %p173 = scmp.ne.s32.totalorder %s159, %s160
      %p174 = scmp.eq.s32.totalorder %s21, 1
      %p175 = por %p173, %p174
      %p177 = scmp.ne.s32.totalorder %s160, %s176
      %p178 = scmp.eq.s32.totalorder %s21, 0
      %p179 = por %p177, %p178
      %p180 = scmp.le.s32.totalorder 1, %s15
      %p181 = scmp.lt.s32.totalorder %s15, 3
      %p182 = pnand %p180, %p181
      %p183 = pneg %p182
      // Predicated region
      $region9: #{sscl_forward.1} parent=5 // pred_check
        _
      $region10: #{sscl_forward.1} parent=5 // pred_check_branch
        %185 = sbr.rel (%p182) target = $region12
      $region11: #{sscl_forward.1} parent=5 // pred_region
        %s186 = ssub.s32 %s15, 1
        // Predicated region
        $region13: #{sscl_forward.1} parent=11 // pred_check
          %p187 = pneg %p62
        $region14: #{sscl_forward.1} parent=11 // pred_check_branch
          %189 = sbr.rel (%p187) target = $region16
        $region15: #{sscl_forward.1} parent=11 // pred_region
          _
        $region16: #{sscl_forward.1} parent=11 // pred_fallthru
          _
        // Predicated region
        $region17: #{sscl_forward.1} parent=11 // pred_check
          %p190 = pneg %p83
        $region18: #{sscl_forward.1} parent=11 // pred_check_branch
          %192 = sbr.rel (%p190) target = $region20
        $region19: #{sscl_forward.1} parent=11 // pred_region
          _
        $region20: #{sscl_forward.1} parent=11 // pred_fallthru
          _
        // Predicated region
        $region21: #{sscl_forward.1} parent=11 // pred_check
          %p193 = pneg %p104
        $region22: #{sscl_forward.1} parent=11 // pred_check_branch
          %195 = sbr.rel (%p193) target = $region24
        $region23: #{sscl_forward.1} parent=11 // pred_region
          _
        $region24: #{sscl_forward.1} parent=11 // pred_fallthru
          _
        // Predicated region
        $region25: #{sscl_forward.1} parent=11 // pred_check
          %p196 = pneg %p125
        $region26: #{sscl_forward.1} parent=11 // pred_check_branch
          %198 = sbr.rel (%p196) target = $region28
        $region27: #{sscl_forward.1} parent=11 // pred_region
          _
        $region28: #{sscl_forward.1} parent=11 // pred_fallthru
          _
        // Predicated region
        $region29: #{sscl_forward.1} parent=11 // pred_check
          %p199 = pneg %p146
        $region30: #{sscl_forward.1} parent=11 // pred_check_branch
          %201 = sbr.rel (%p199) target = $region32
        $region31: #{sscl_forward.1} parent=11 // pred_region
          _
        $region32: #{sscl_forward.1} parent=11 // pred_fallthru
          _
      $region12: #{sscl_forward.1} parent=5 // pred_fallthru
        _
      %p202 = scmp.lt.s32.totalorder %s15, 2
      // Predicated region
      $region33: #{sscl_forward.1} parent=5 // pred_check
        %p203 = pneg %p202
      $region34: #{sscl_forward.1} parent=5 // pred_check_branch
        %205 = sbr.rel (%p203) target = $region36
      $region35: #{sscl_forward.1} parent=5 // pred_region
        // Predicated region
        $region37: #{sscl_forward.1} parent=35 // pred_check
          %p206 = pneg %p35
        $region38: #{sscl_forward.1} parent=35 // pred_check_branch
          %208 = sbr.rel (%p206) target = $region40
        $region39: #{sscl_forward.1} parent=35 // pred_region
          %p209 = scmp.lt.s32.totalorder %s15, 1
          %s210 = scalar_select %p209, %s15, 1
          %s211 = smul.addr %s210, 160
          %s212 = smul.addr %s211, 4
          %s213 = scalar_lea.vmem %s0, %s212
        $region40: #{sscl_forward.1} parent=35 // pred_fallthru
          _
      $region36: #{sscl_forward.1} parent=5 // pred_fallthru
        _
      %p214 = scmp.le.s32.totalorder 1, %s15
      %p215 = scmp.lt.s32.totalorder %s15, 3
      %p216 = pnand %p214, %p215
      %p217 = pneg %p216
      // Predicated region
      $region41: #{sscl_forward.1} parent=5 // pred_check
        _
      $region42: #{sscl_forward.1} parent=5 // pred_check_branch
        %219 = sbr.rel (%p216) target = $region44
      $region43: #{sscl_forward.1} parent=5 // pred_region
        %s220 = ssub.s32 %s15, 1
        %p221 = scmp.lt.s32.totalorder %s20, 1
        %s222 = scalar_select %p221, %s20, 1
        %s223 = smul.addr %s222, 160
        %s224 = smul.addr %s223, 4
        %s225 = scalar_lea.vmem %s0, %s224
        %p226 = pneg %p41
        %p227 = pneg %p38
        %p228 = pneg %p62
        %p229 = pneg %p59
        %p230 = pneg %p83
        %p231 = pneg %p80
        %p232 = pneg %p104
        %p233 = pneg %p101
        %p234 = pneg %p125
        %p235 = pneg %p122
        %p236 = pneg %p146
        %p237 = pneg %p143
        %p238 = pneg %p172
        %p239 = pneg %p169
        %s240 = sand.u32 %s159, 1
        %s241 = scalar_lea.sflag [#allocation4], %s240
        %s242 = sand.u32 %s159, 1
        %s243 = scalar_lea.vmem [#allocation3], %s242
        %p244 = scmp.lt.s32.totalorder %s20, 1
        %s245 = scalar_select %p244, %s20, 1
        %s246 = smul.addr %s245, 160
        %s247 = smul.addr %s246, 4
        %s248 = scalar_lea.vmem %s0, %s247
        %v250 = vld [vmem:[%s1] sm:$0xff]
        %v251 = vld [vmem:[%s1 + $0x8] sm:$0xff]
        %v252 = vld [vmem:[%s1 + $0x10] sm:$0xff]
        %v253 = vld [vmem:[%s1 + $0x18] sm:$0xff]
        %v254 = vld [vmem:[%s248] sm:$0xff]
        %v255 = vld [vmem:[%s248 + $0x8] sm:$0xff]
        %v256 = vld [vmem:[%s248 + $0x10] sm:$0xff]
        %v257 = vld [vmem:[%s248 + $0x18] sm:$0xff]
        %v258 = vld [vmem:[%s248 + $0x20] sm:$0xff]
        %v259 = vld [vmem:[%s248 + $0x28] sm:$0xff]
        %v260 = vld [vmem:[%s248 + $0x30] sm:$0xff]
        %v261 = vld [vmem:[%s248 + $0x38] sm:$0xff]
        %v262 = vld [vmem:[%s248 + $0x40] sm:$0xff]
        %v263 = vld [vmem:[%s248 + $0x48] sm:$0xff]
        %v264 = vld [vmem:[%s248 + $0x50] sm:$0xff]
        %v265 = vld [vmem:[%s248 + $0x58] sm:$0xff]
        %v266 = vld [vmem:[%s248 + $0x60] sm:$0xff]
        %v267 = vld [vmem:[%s248 + $0x68] sm:$0xff]
        %v268 = vld [vmem:[%s248 + $0x70] sm:$0xff]
        %v269 = vld [vmem:[%s248 + $0x78] sm:$0xff]
        %v270 = vld [vmem:[%s248 + $0x80] sm:$0xff]
        %v271 = vld [vmem:[%s248 + $0x88] sm:$0xff]
        %v272 = vld [vmem:[%s248 + $0x90] sm:$0xff]
        %v273 = vld [vmem:[%s248 + $0x98] sm:$0xff]
        %v274 = vld [vmem:[%s248 + $0xa0] sm:$0xff]
        %v275 = vld [vmem:[%s248 + $0xa8] sm:$0xff]
        %v276 = vld [vmem:[%s248 + $0xb0] sm:$0xff]
        %v277 = vld [vmem:[%s248 + $0xb8] sm:$0xff]
        %v278 = vld [vmem:[%s248 + $0xc0] sm:$0xff]
        %v279 = vld [vmem:[%s248 + $0xc8] sm:$0xff]
        %v280 = vld [vmem:[%s248 + $0xd0] sm:$0xff]
        %v281 = vld [vmem:[%s248 + $0xd8] sm:$0xff]
        %v282 = vld [vmem:[%s248 + $0xe0] sm:$0xff]
        %v283 = vld [vmem:[%s248 + $0xe8] sm:$0xff]
        %v284 = vld [vmem:[%s248 + $0xf0] sm:$0xff]
        %v285 = vld [vmem:[%s248 + $0xf8] sm:$0xff]
        %v286 = vld [vmem:[%s248 + $0x100] sm:$0xff]
        %v287 = vld [vmem:[%s248 + $0x108] sm:$0xff]
        %v288 = vld [vmem:[%s248 + $0x110] sm:$0xff]
        %v289 = vld [vmem:[%s248 + $0x118] sm:$0xff]
        %v290 = vld [vmem:[%s248 + $0x120] sm:$0xff]
        %v291 = vld [vmem:[%s248 + $0x128] sm:$0xff]
        %v292 = vld [vmem:[%s248 + $0x130] sm:$0xff]
        %v293 = vld [vmem:[%s248 + $0x138] sm:$0xff]
        %v294 = vld [vmem:[%s248 + $0x140] sm:$0xff]
        %v295 = vld [vmem:[%s248 + $0x148] sm:$0xff]
        %v296 = vld [vmem:[%s248 + $0x150] sm:$0xff]
        %v297 = vld [vmem:[%s248 + $0x158] sm:$0xff]
        %v298 = vld [vmem:[%s248 + $0x160] sm:$0xff]
        %v299 = vld [vmem:[%s248 + $0x168] sm:$0xff]
        %v300 = vld [vmem:[%s248 + $0x170] sm:$0xff]
        %v301 = vld [vmem:[%s248 + $0x178] sm:$0xff]
        %v302 = vld [vmem:[%s248 + $0x180] sm:$0xff]
        %v303 = vld [vmem:[%s248 + $0x188] sm:$0xff]
        %v304 = vld [vmem:[%s248 + $0x190] sm:$0xff]
        %v305 = vld [vmem:[%s248 + $0x198] sm:$0xff]
        %v306 = vld [vmem:[%s248 + $0x1a0] sm:$0xff]
        %v307 = vld [vmem:[%s248 + $0x1a8] sm:$0xff]
        %v308 = vld [vmem:[%s248 + $0x1b0] sm:$0xff]
        %v309 = vld [vmem:[%s248 + $0x1b8] sm:$0xff]
        %v310 = vld [vmem:[%s248 + $0x1c0] sm:$0xff]
        %v311 = vld [vmem:[%s248 + $0x1c8] sm:$0xff]
        %v312 = vld [vmem:[%s248 + $0x1d0] sm:$0xff]
        %v313 = vld [vmem:[%s248 + $0x1d8] sm:$0xff]
        %v314 = vld [vmem:[%s248 + $0x1e0] sm:$0xff]
        %v315 = vld [vmem:[%s248 + $0x1e8] sm:$0xff]
        %v316 = vld [vmem:[%s248 + $0x1f0] sm:$0xff]
        %v317 = vld [vmem:[%s248 + $0x1f8] sm:$0xff]
        %v318 = vld [vmem:[%s248 + $0x200] sm:$0xff]
        %v319 = vld [vmem:[%s248 + $0x208] sm:$0xff]
        %v320 = vld [vmem:[%s248 + $0x210] sm:$0xff]
        %v321 = vld [vmem:[%s248 + $0x218] sm:$0xff]
        %v322 = vld [vmem:[%s248 + $0x220] sm:$0xff]
        %v323 = vld [vmem:[%s248 + $0x228] sm:$0xff]
        %v324 = vld [vmem:[%s248 + $0x230] sm:$0xff]
        %v325 = vld [vmem:[%s248 + $0x238] sm:$0xff]
        %v326 = vld [vmem:[%s248 + $0x240] sm:$0xff]
        %v327 = vld [vmem:[%s248 + $0x248] sm:$0xff]
        %v328 = vld [vmem:[%s248 + $0x250] sm:$0xff]
        %v329 = vld [vmem:[%s248 + $0x258] sm:$0xff]
        %v330 = vld [vmem:[%s248 + $0x260] sm:$0xff]
        %v331 = vld [vmem:[%s248 + $0x268] sm:$0xff]
        %v332 = vld [vmem:[%s248 + $0x270] sm:$0xff]
        %v333 = vld [vmem:[%s248 + $0x278] sm:$0xff]
        %v334 = vld [vmem:[%s2] sm:$0xff]
        %v335 = vld [vmem:[%s2 + $0x8] sm:$0xff]
        %v336 = vld [vmem:[%s2 + $0x10] sm:$0xff]
        %v337 = vld [vmem:[%s2 + $0x18] sm:$0xff]
        %339 = vset.pattern.permute.xlu0 0
        %340 = vperm.xlu0 %339, %v334
        %v341 = vpop.permute.xlu0 %340
        %344 = vset.pattern.permute.xlu0 0
        %345 = vperm.xlu0 %344, %v335
        %v346 = vpop.permute.xlu0 %345
        %349 = vset.pattern.permute.xlu0 0
        %350 = vperm.xlu0 %349, %v336
        %v351 = vpop.permute.xlu0 %350
        %354 = vset.pattern.permute.xlu0 0
        %355 = vperm.xlu0 %354, %v337
        %v356 = vpop.permute.xlu0 %355
        %v362 = vunpack.c.l.b16 %v250
        %v363 = vunpack.c.h.b16 %v250
        %v364 = vunpack.c.l.b16 %v251
        %v365 = vunpack.c.h.b16 %v251
        %v366 = vunpack.c.l.b16 %v252
        %v367 = vunpack.c.h.b16 %v252
        %v368 = vunpack.c.l.b16 %v253
        %v369 = vunpack.c.h.b16 %v253
        %v370 = vpack.c.b16 %v364, %v362
        %v371 = vpack.c.b16 %v365, %v363
        %v372 = vpack.c.b16 %v368, %v366
        %v373 = vpack.c.b16 %v369, %v367
        %v456 = vunpack.c.l.b16 %v254
        %v457 = vunpack.c.h.b16 %v254
        %v458 = vunpack.c.l.b16 %v255
        %v459 = vunpack.c.h.b16 %v255
        %v460 = vunpack.c.l.b16 %v256
        %v461 = vunpack.c.h.b16 %v256
        %v462 = vunpack.c.l.b16 %v257
        %v463 = vunpack.c.h.b16 %v257
        %v464 = vunpack.c.l.b16 %v258
        %v465 = vunpack.c.h.b16 %v258
        %v466 = vunpack.c.l.b16 %v259
        %v467 = vunpack.c.h.b16 %v259
        %v468 = vunpack.c.l.b16 %v260
        %v469 = vunpack.c.h.b16 %v260
        %v470 = vunpack.c.l.b16 %v261
        %v471 = vunpack.c.h.b16 %v261
        %v472 = vunpack.c.l.b16 %v262
        %v473 = vunpack.c.h.b16 %v262
        %v474 = vunpack.c.l.b16 %v263
        %v475 = vunpack.c.h.b16 %v263
        %v476 = vunpack.c.l.b16 %v264
        %v477 = vunpack.c.h.b16 %v264
        %v478 = vunpack.c.l.b16 %v265
        %v479 = vunpack.c.h.b16 %v265
        %v480 = vunpack.c.l.b16 %v266
        %v481 = vunpack.c.h.b16 %v266
        %v482 = vunpack.c.l.b16 %v267
        %v483 = vunpack.c.h.b16 %v267
        %v484 = vunpack.c.l.b16 %v268
        %v485 = vunpack.c.h.b16 %v268
        %v486 = vunpack.c.l.b16 %v269
        %v487 = vunpack.c.h.b16 %v269
        %v488 = vunpack.c.l.b16 %v270
        %v489 = vunpack.c.h.b16 %v270
        %v490 = vunpack.c.l.b16 %v271
        %v491 = vunpack.c.h.b16 %v271
        %v492 = vunpack.c.l.b16 %v272
        %v493 = vunpack.c.h.b16 %v272
        %v494 = vunpack.c.l.b16 %v273
        %v495 = vunpack.c.h.b16 %v273
        %v496 = vunpack.c.l.b16 %v274
        %v497 = vunpack.c.h.b16 %v274
        %v498 = vunpack.c.l.b16 %v275
        %v499 = vunpack.c.h.b16 %v275
        %v500 = vunpack.c.l.b16 %v276
        %v501 = vunpack.c.h.b16 %v276
        %v502 = vunpack.c.l.b16 %v277
        %v503 = vunpack.c.h.b16 %v277
        %v504 = vunpack.c.l.b16 %v278
        %v505 = vunpack.c.h.b16 %v278
        %v506 = vunpack.c.l.b16 %v279
        %v507 = vunpack.c.h.b16 %v279
        %v508 = vunpack.c.l.b16 %v280
        %v509 = vunpack.c.h.b16 %v280
        %v510 = vunpack.c.l.b16 %v281
        %v511 = vunpack.c.h.b16 %v281
        %v512 = vunpack.c.l.b16 %v282
        %v513 = vunpack.c.h.b16 %v282
        %v514 = vunpack.c.l.b16 %v283
        %v515 = vunpack.c.h.b16 %v283
        %v516 = vunpack.c.l.b16 %v284
        %v517 = vunpack.c.h.b16 %v284
        %v518 = vunpack.c.l.b16 %v285
        %v519 = vunpack.c.h.b16 %v285
        %v520 = vunpack.c.l.b16 %v286
        %v521 = vunpack.c.h.b16 %v286
        %v522 = vunpack.c.l.b16 %v287
        %v523 = vunpack.c.h.b16 %v287
        %v524 = vunpack.c.l.b16 %v288
        %v525 = vunpack.c.h.b16 %v288
        %v526 = vunpack.c.l.b16 %v289
        %v527 = vunpack.c.h.b16 %v289
        %v528 = vunpack.c.l.b16 %v290
        %v529 = vunpack.c.h.b16 %v290
        %v530 = vunpack.c.l.b16 %v291
        %v531 = vunpack.c.h.b16 %v291
        %v532 = vunpack.c.l.b16 %v292
        %v533 = vunpack.c.h.b16 %v292
        %v534 = vunpack.c.l.b16 %v293
        %v535 = vunpack.c.h.b16 %v293
        %v536 = vunpack.c.l.b16 %v294
        %v537 = vunpack.c.h.b16 %v294
        %v538 = vunpack.c.l.b16 %v295
        %v539 = vunpack.c.h.b16 %v295
        %v540 = vunpack.c.l.b16 %v296
        %v541 = vunpack.c.h.b16 %v296
        %v542 = vunpack.c.l.b16 %v297
        %v543 = vunpack.c.h.b16 %v297
        %v544 = vunpack.c.l.b16 %v298
        %v545 = vunpack.c.h.b16 %v298
        %v546 = vunpack.c.l.b16 %v299
        %v547 = vunpack.c.h.b16 %v299
        %v548 = vunpack.c.l.b16 %v300
        %v549 = vunpack.c.h.b16 %v300
        %v550 = vunpack.c.l.b16 %v301
        %v551 = vunpack.c.h.b16 %v301
        %v552 = vunpack.c.l.b16 %v302
        %v553 = vunpack.c.h.b16 %v302
        %v554 = vunpack.c.l.b16 %v303
        %v555 = vunpack.c.h.b16 %v303
        %v556 = vunpack.c.l.b16 %v304
        %v557 = vunpack.c.h.b16 %v304
        %v558 = vunpack.c.l.b16 %v305
        %v559 = vunpack.c.h.b16 %v305
        %v560 = vunpack.c.l.b16 %v306
        %v561 = vunpack.c.h.b16 %v306
        %v562 = vunpack.c.l.b16 %v307
        %v563 = vunpack.c.h.b16 %v307
        %v564 = vunpack.c.l.b16 %v308
        %v565 = vunpack.c.h.b16 %v308
        %v566 = vunpack.c.l.b16 %v309
        %v567 = vunpack.c.h.b16 %v309
        %v568 = vunpack.c.l.b16 %v310
        %v569 = vunpack.c.h.b16 %v310
        %v570 = vunpack.c.l.b16 %v311
        %v571 = vunpack.c.h.b16 %v311
        %v572 = vunpack.c.l.b16 %v312
        %v573 = vunpack.c.h.b16 %v312
        %v574 = vunpack.c.l.b16 %v313
        %v575 = vunpack.c.h.b16 %v313
        %v576 = vunpack.c.l.b16 %v314
        %v577 = vunpack.c.h.b16 %v314
        %v578 = vunpack.c.l.b16 %v315
        %v579 = vunpack.c.h.b16 %v315
        %v580 = vunpack.c.l.b16 %v316
        %v581 = vunpack.c.h.b16 %v316
        %v582 = vunpack.c.l.b16 %v317
        %v583 = vunpack.c.h.b16 %v317
        %v584 = vunpack.c.l.b16 %v318
        %v585 = vunpack.c.h.b16 %v318
        %v586 = vunpack.c.l.b16 %v319
        %v587 = vunpack.c.h.b16 %v319
        %v588 = vunpack.c.l.b16 %v320
        %v589 = vunpack.c.h.b16 %v320
        %v590 = vunpack.c.l.b16 %v321
        %v591 = vunpack.c.h.b16 %v321
        %v592 = vunpack.c.l.b16 %v322
        %v593 = vunpack.c.h.b16 %v322
        %v594 = vunpack.c.l.b16 %v323
        %v595 = vunpack.c.h.b16 %v323
        %v596 = vunpack.c.l.b16 %v324
        %v597 = vunpack.c.h.b16 %v324
        %v598 = vunpack.c.l.b16 %v325
        %v599 = vunpack.c.h.b16 %v325
        %v600 = vunpack.c.l.b16 %v326
        %v601 = vunpack.c.h.b16 %v326
        %v602 = vunpack.c.l.b16 %v327
        %v603 = vunpack.c.h.b16 %v327
        %v604 = vunpack.c.l.b16 %v328
        %v605 = vunpack.c.h.b16 %v328
        %v606 = vunpack.c.l.b16 %v329
        %v607 = vunpack.c.h.b16 %v329
        %v608 = vunpack.c.l.b16 %v330
        %v609 = vunpack.c.h.b16 %v330
        %v610 = vunpack.c.l.b16 %v331
        %v611 = vunpack.c.h.b16 %v331
        %v612 = vunpack.c.l.b16 %v332
        %v613 = vunpack.c.h.b16 %v332
        %v614 = vunpack.c.l.b16 %v333
        %v615 = vunpack.c.h.b16 %v333
        %v616 = vpack.c.b16 %v464, %v456
        %v617 = vpack.c.b16 %v465, %v457
        %v618 = vpack.c.b16 %v466, %v458
        %v619 = vpack.c.b16 %v467, %v459
        %v620 = vpack.c.b16 %v468, %v460
        %v621 = vpack.c.b16 %v469, %v461
        %v622 = vpack.c.b16 %v470, %v462
        %v623 = vpack.c.b16 %v471, %v463
        %v624 = vpack.c.b16 %v480, %v472
        %v625 = vpack.c.b16 %v481, %v473
        %v626 = vpack.c.b16 %v482, %v474
        %v627 = vpack.c.b16 %v483, %v475
        %v628 = vpack.c.b16 %v484, %v476
        %v629 = vpack.c.b16 %v485, %v477
        %v630 = vpack.c.b16 %v486, %v478
        %v631 = vpack.c.b16 %v487, %v479
        %v632 = vpack.c.b16 %v496, %v488
        %v633 = vpack.c.b16 %v497, %v489
        %v634 = vpack.c.b16 %v498, %v490
        %v635 = vpack.c.b16 %v499, %v491
        %v636 = vpack.c.b16 %v500, %v492
        %v637 = vpack.c.b16 %v501, %v493
        %v638 = vpack.c.b16 %v502, %v494
        %v639 = vpack.c.b16 %v503, %v495
        %v640 = vpack.c.b16 %v512, %v504
        %v641 = vpack.c.b16 %v513, %v505
        %v642 = vpack.c.b16 %v514, %v506
        %v643 = vpack.c.b16 %v515, %v507
        %v644 = vpack.c.b16 %v516, %v508
        %v645 = vpack.c.b16 %v517, %v509
        %v646 = vpack.c.b16 %v518, %v510
        %v647 = vpack.c.b16 %v519, %v511
        %v648 = vpack.c.b16 %v528, %v520
        %v649 = vpack.c.b16 %v529, %v521
        %v650 = vpack.c.b16 %v530, %v522
        %v651 = vpack.c.b16 %v531, %v523
        %v652 = vpack.c.b16 %v532, %v524
        %v653 = vpack.c.b16 %v533, %v525
        %v654 = vpack.c.b16 %v534, %v526
        %v655 = vpack.c.b16 %v535, %v527
        %v656 = vpack.c.b16 %v544, %v536
        %v657 = vpack.c.b16 %v545, %v537
        %v658 = vpack.c.b16 %v546, %v538
        %v659 = vpack.c.b16 %v547, %v539
        %v660 = vpack.c.b16 %v548, %v540
        %v661 = vpack.c.b16 %v549, %v541
        %v662 = vpack.c.b16 %v550, %v542
        %v663 = vpack.c.b16 %v551, %v543
        %v664 = vpack.c.b16 %v560, %v552
        %v665 = vpack.c.b16 %v561, %v553
        %v666 = vpack.c.b16 %v562, %v554
        %v667 = vpack.c.b16 %v563, %v555
        %v668 = vpack.c.b16 %v564, %v556
        %v669 = vpack.c.b16 %v565, %v557
        %v670 = vpack.c.b16 %v566, %v558
        %v671 = vpack.c.b16 %v567, %v559
        %v672 = vpack.c.b16 %v576, %v568
        %v673 = vpack.c.b16 %v577, %v569
        %v674 = vpack.c.b16 %v578, %v570
        %v675 = vpack.c.b16 %v579, %v571
        %v676 = vpack.c.b16 %v580, %v572
        %v677 = vpack.c.b16 %v581, %v573
        %v678 = vpack.c.b16 %v582, %v574
        %v679 = vpack.c.b16 %v583, %v575
        %v680 = vpack.c.b16 %v592, %v584
        %v681 = vpack.c.b16 %v593, %v585
        %v682 = vpack.c.b16 %v594, %v586
        %v683 = vpack.c.b16 %v595, %v587
        %v684 = vpack.c.b16 %v596, %v588
        %v685 = vpack.c.b16 %v597, %v589
        %v686 = vpack.c.b16 %v598, %v590
        %v687 = vpack.c.b16 %v599, %v591
        %v688 = vpack.c.b16 %v608, %v600
        %v689 = vpack.c.b16 %v609, %v601
        %v690 = vpack.c.b16 %v610, %v602
        %v691 = vpack.c.b16 %v611, %v603
        %v692 = vpack.c.b16 %v612, %v604
        %v693 = vpack.c.b16 %v613, %v605
        %v694 = vpack.c.b16 %v614, %v606
        %v695 = vpack.c.b16 %v615, %v607
        %vm776 = vcmask 261120
        %v778 = vsel %vm776, %v371, 0
        %v781 = vsel %vm776, %v373, 0
        %783 = vmatprep.subr.bf16.mxu0 %v673
        %784 = vmatpush1.bf16.msra.mxu0 %v672
        %785 = vmatprep.subr.bf16.mxu0 %v665
        %786 = vmatpush1.bf16.msra.mxu0 %v664
        %787 = vmatprep.subr.bf16.mxu0 %v657
        %788 = vmatpush1.bf16.msra.mxu0 %v656
        %789 = vmatprep.subr.bf16.mxu0 %v649
        %790 = vmatpush1.bf16.msra.mxu0 %v648
        %791 = vmatprep.subr.bf16.mxu0 %v641
        %792 = vmatpush1.bf16.msra.mxu0 %v640
        %793 = vmatprep.subr.bf16.mxu0 %v633
        %794 = vmatpush1.bf16.msra.mxu0 %v632
        %795 = vmatprep.subr.bf16.mxu0 %v625
        %796 = vmatpush1.bf16.msra.mxu0 %v624
        %797 = vmatprep.subr.bf16.mxu0 %v617
        %798 = vmatpush1.bf16.msra.mxu0 %v616
        %799 = vmatprep.subr.bf16.mxu0 0
        %800 = vmatpush2.bf16.msra.mxu0 0
        %801 = vmatprep.subr.bf16.mxu0 0
        %802 = vmatpush2.bf16.msra.mxu0 0
        %803 = vmatprep.subr.bf16.mxu0 0
        %804 = vmatpush2.bf16.msra.mxu0 0
        %805 = vmatprep.subr.bf16.mxu0 0
        %806 = vmatpush2.bf16.msra.mxu0 0
        %807 = vmatprep.subr.bf16.mxu0 0
        %808 = vmatpush2.bf16.msra.mxu0 0
        %809 = vmatprep.subr.bf16.mxu0 0
        %810 = vmatpush2.bf16.msra.mxu0 0
        %811 = vmatprep.subr.bf16.mxu0 %v689
        %812 = vmatpush2.bf16.msra.mxu0 %v688
        %813 = vmatprep.subr.bf16.mxu0 %v681
        %814 = vmatpush2.bf16.msra.mxu0 %v680
        %815 = vmatprep.mubr.bf16.mxu0 %v778
        %816 = vmatmul.mubr.bf16.gmra.mxu0 %v370
        %v817 = vpop.f32.mrf.mxu0
        %v818 = vadd.f32 %v341, %v817
        %v819 = vpop.f32.mrf.mxu0
        %v820 = vadd.f32 %v341, %v819
        %v821 = vpop.f32.mrf.mxu0
        %v822 = vadd.f32 %v346, %v821
        %v823 = vpop.f32.mrf.mxu0
        %v824 = vadd.f32 %v346, %v823
        %825 = vmatprep.mubr.bf16.mxu0 %v781
        %826 = vmatmul.mubr.bf16.gmra.mxu0 %v372
        %v827 = vpop.f32.mrf.mxu0
        %v828 = vadd.f32 %v351, %v827
        %v829 = vpop.f32.mrf.mxu0
        %v830 = vadd.f32 %v351, %v829
        %v831 = vpop.f32.mrf.mxu0
        %v832 = vadd.f32 %v356, %v831
        %v833 = vpop.f32.mrf.mxu0
        %v834 = vadd.f32 %v356, %v833
        %835 = vdwg.mxu0
        %836 = vmatprep.subr.bf16.mxu0 %v675
        %837 = vmatpush1.bf16.msra.mxu0 %v674
        %838 = vmatprep.subr.bf16.mxu0 %v667
        %839 = vmatpush1.bf16.msra.mxu0 %v666
        %840 = vmatprep.subr.bf16.mxu0 %v659
        %841 = vmatpush1.bf16.msra.mxu0 %v658
        %842 = vmatprep.subr.bf16.mxu0 %v651
        %843 = vmatpush1.bf16.msra.mxu0 %v650
        %844 = vmatprep.subr.bf16.mxu0 %v643
        %845 = vmatpush1.bf16.msra.mxu0 %v642
        %846 = vmatprep.subr.bf16.mxu0 %v635
        %847 = vmatpush1.bf16.msra.mxu0 %v634
        %848 = vmatprep.subr.bf16.mxu0 %v627
        %849 = vmatpush1.bf16.msra.mxu0 %v626
        %850 = vmatprep.subr.bf16.mxu0 %v619
        %851 = vmatpush1.bf16.msra.mxu0 %v618
        %852 = vmatprep.subr.bf16.mxu0 0
        %853 = vmatpush2.bf16.msra.mxu0 0
        %854 = vmatprep.subr.bf16.mxu0 0
        %855 = vmatpush2.bf16.msra.mxu0 0
        %856 = vmatprep.subr.bf16.mxu0 0
        %857 = vmatpush2.bf16.msra.mxu0 0
        %858 = vmatprep.subr.bf16.mxu0 0
        %859 = vmatpush2.bf16.msra.mxu0 0
        %860 = vmatprep.subr.bf16.mxu0 0
        %861 = vmatpush2.bf16.msra.mxu0 0
        %862 = vmatprep.subr.bf16.mxu0 0
        %863 = vmatpush2.bf16.msra.mxu0 0
        %864 = vmatprep.subr.bf16.mxu0 %v691
        %865 = vmatpush2.bf16.msra.mxu0 %v690
        %866 = vmatprep.subr.bf16.mxu0 %v683
        %867 = vmatpush2.bf16.msra.mxu0 %v682
        %868 = vmatprep.mubr.bf16.mxu0 %v778
        %869 = vmatmul.mubr.bf16.gmra.mxu0 %v370
        %v870 = vpop.f32.mrf.mxu0
        %v871 = vadd.f32 %v341, %v870
        %v872 = vpop.f32.mrf.mxu0
        %v873 = vadd.f32 %v341, %v872
        %v874 = vpop.f32.mrf.mxu0
        %v875 = vadd.f32 %v346, %v874
        %v876 = vpop.f32.mrf.mxu0
        %v877 = vadd.f32 %v346, %v876
        %878 = vmatprep.mubr.bf16.mxu0 %v781
        %879 = vmatmul.mubr.bf16.gmra.mxu0 %v372
        %v880 = vpop.f32.mrf.mxu0
        %v881 = vadd.f32 %v351, %v880
        %v882 = vpop.f32.mrf.mxu0
        %v883 = vadd.f32 %v351, %v882
        %v884 = vpop.f32.mrf.mxu0
        %v885 = vadd.f32 %v356, %v884
        %v886 = vpop.f32.mrf.mxu0
        %v887 = vadd.f32 %v356, %v886
        %888 = vdwg.mxu0
        %889 = vmatprep.subr.bf16.mxu0 %v677
        %890 = vmatpush1.bf16.msra.mxu0 %v676
        %891 = vmatprep.subr.bf16.mxu0 %v669
        %892 = vmatpush1.bf16.msra.mxu0 %v668
        %893 = vmatprep.subr.bf16.mxu0 %v661
        %894 = vmatpush1.bf16.msra.mxu0 %v660
        %895 = vmatprep.subr.bf16.mxu0 %v653
        %896 = vmatpush1.bf16.msra.mxu0 %v652
        %897 = vmatprep.subr.bf16.mxu0 %v645
        %898 = vmatpush1.bf16.msra.mxu0 %v644
        %899 = vmatprep.subr.bf16.mxu0 %v637
        %900 = vmatpush1.bf16.msra.mxu0 %v636
        %901 = vmatprep.subr.bf16.mxu0 %v629
        %902 = vmatpush1.bf16.msra.mxu0 %v628
        %903 = vmatprep.subr.bf16.mxu0 %v621
        %904 = vmatpush1.bf16.msra.mxu0 %v620
        %905 = vmatprep.subr.bf16.mxu0 0
        %906 = vmatpush2.bf16.msra.mxu0 0
        %907 = vmatprep.subr.bf16.mxu0 0
        %908 = vmatpush2.bf16.msra.mxu0 0
        %909 = vmatprep.subr.bf16.mxu0 0
        %910 = vmatpush2.bf16.msra.mxu0 0
        %911 = vmatprep.subr.bf16.mxu0 0
        %912 = vmatpush2.bf16.msra.mxu0 0
        %913 = vmatprep.subr.bf16.mxu0 0
        %914 = vmatpush2.bf16.msra.mxu0 0
        %915 = vmatprep.subr.bf16.mxu0 0
        %916 = vmatpush2.bf16.msra.mxu0 0
        %917 = vmatprep.subr.bf16.mxu0 %v693
        %918 = vmatpush2.bf16.msra.mxu0 %v692
        %919 = vmatprep.subr.bf16.mxu0 %v685
        %920 = vmatpush2.bf16.msra.mxu0 %v684
        %921 = vmatprep.mubr.bf16.mxu0 %v778
        %922 = vmatmul.mubr.bf16.gmra.mxu0 %v370
        %v923 = vpop.f32.mrf.mxu0
        %v924 = vadd.f32 %v341, %v923
        %v925 = vpop.f32.mrf.mxu0
        %v926 = vadd.f32 %v341, %v925
        %v927 = vpop.f32.mrf.mxu0
        %v928 = vadd.f32 %v346, %v927
        %v929 = vpop.f32.mrf.mxu0
        %v930 = vadd.f32 %v346, %v929
        %931 = vmatprep.mubr.bf16.mxu0 %v781
        %932 = vmatmul.mubr.bf16.gmra.mxu0 %v372
        %v933 = vpop.f32.mrf.mxu0
        %v934 = vadd.f32 %v351, %v933
        %v935 = vpop.f32.mrf.mxu0
        %v936 = vadd.f32 %v351, %v935
        %v937 = vpop.f32.mrf.mxu0
        %v938 = vadd.f32 %v356, %v937
        %v939 = vpop.f32.mrf.mxu0
        %v940 = vadd.f32 %v356, %v939
        %941 = vdwg.mxu0
        %942 = vmatprep.subr.bf16.mxu0 %v679
        %943 = vmatpush1.bf16.msra.mxu0 %v678
        %944 = vmatprep.subr.bf16.mxu0 %v671
        %945 = vmatpush1.bf16.msra.mxu0 %v670
        %946 = vmatprep.subr.bf16.mxu0 %v663
        %947 = vmatpush1.bf16.msra.mxu0 %v662
        %948 = vmatprep.subr.bf16.mxu0 %v655
        %949 = vmatpush1.bf16.msra.mxu0 %v654
        %950 = vmatprep.subr.bf16.mxu0 %v647
        %951 = vmatpush1.bf16.msra.mxu0 %v646
        %952 = vmatprep.subr.bf16.mxu0 %v639
        %953 = vmatpush1.bf16.msra.mxu0 %v638
        %954 = vmatprep.subr.bf16.mxu0 %v631
        %955 = vmatpush1.bf16.msra.mxu0 %v630
        %956 = vmatprep.subr.bf16.mxu0 %v623
        %957 = vmatpush1.bf16.msra.mxu0 %v622
        %958 = vmatprep.subr.bf16.mxu0 0
        %959 = vmatpush2.bf16.msra.mxu0 0
        %960 = vmatprep.subr.bf16.mxu0 0
        %961 = vmatpush2.bf16.msra.mxu0 0
        %962 = vmatprep.subr.bf16.mxu0 0
        %963 = vmatpush2.bf16.msra.mxu0 0
        %964 = vmatprep.subr.bf16.mxu0 0
        %965 = vmatpush2.bf16.msra.mxu0 0
        %966 = vmatprep.subr.bf16.mxu0 0
        %967 = vmatpush2.bf16.msra.mxu0 0
        %968 = vmatprep.subr.bf16.mxu0 0
        %969 = vmatpush2.bf16.msra.mxu0 0
        %970 = vmatprep.subr.bf16.mxu0 %v695
        %971 = vmatpush2.bf16.msra.mxu0 %v694
        %972 = vmatprep.subr.bf16.mxu0 %v687
        %973 = vmatpush2.bf16.msra.mxu0 %v686
        %974 = vmatprep.mubr.bf16.mxu0 %v778
        %975 = vmatmul.mubr.bf16.gmra.mxu0 %v370
        %v976 = vpop.f32.mrf.mxu0
        %v977 = vadd.f32 %v341, %v976
        %v978 = vpop.f32.mrf.mxu0
        %v979 = vadd.f32 %v341, %v978
        %v980 = vpop.f32.mrf.mxu0
        %v981 = vadd.f32 %v346, %v980
        %v982 = vpop.f32.mrf.mxu0
        %v983 = vadd.f32 %v346, %v982
        %984 = vmatprep.mubr.bf16.mxu0 %v781
        %985 = vmatmul.mubr.bf16.gmra.mxu0 %v372
        %v986 = vpop.f32.mrf.mxu0
        %v987 = vadd.f32 %v351, %v986
        %v988 = vpop.f32.mrf.mxu0
        %v989 = vadd.f32 %v351, %v988
        %v990 = vpop.f32.mrf.mxu0
        %v991 = vadd.f32 %v356, %v990
        %v992 = vpop.f32.mrf.mxu0
        %v993 = vadd.f32 %v356, %v992
        %994 = vdwg.mxu0
        %v995 = vmax.f32 %v818, 0.0
        %v996 = vmax.f32 %v820, 0.0
        %v997 = vmax.f32 %v871, 0.0
        %v998 = vmax.f32 %v873, 0.0
        %v999 = vmax.f32 %v924, 0.0
        %v1000 = vmax.f32 %v926, 0.0
        %v1001 = vmax.f32 %v977, 0.0
        %v1002 = vmax.f32 %v979, 0.0
        %v1003 = vmax.f32 %v822, 0.0
        %v1004 = vmax.f32 %v824, 0.0
        %v1005 = vmax.f32 %v875, 0.0
        %v1006 = vmax.f32 %v877, 0.0
        %v1007 = vmax.f32 %v928, 0.0
        %v1008 = vmax.f32 %v930, 0.0
        %v1009 = vmax.f32 %v981, 0.0
        %v1010 = vmax.f32 %v983, 0.0
        %v1011 = vmax.f32 %v828, 0.0
        %v1012 = vmax.f32 %v830, 0.0
        %v1013 = vmax.f32 %v881, 0.0
        %v1014 = vmax.f32 %v883, 0.0
        %v1015 = vmax.f32 %v934, 0.0
        %v1016 = vmax.f32 %v936, 0.0
        %v1017 = vmax.f32 %v987, 0.0
        %v1018 = vmax.f32 %v989, 0.0
        %v1019 = vmax.f32 %v832, 0.0
        %v1020 = vmax.f32 %v834, 0.0
        %v1021 = vmax.f32 %v885, 0.0
        %v1022 = vmax.f32 %v887, 0.0
        %v1023 = vmax.f32 %v938, 0.0
        %v1024 = vmax.f32 %v940, 0.0
        %v1025 = vmax.f32 %v991, 0.0
        %v1026 = vmax.f32 %v993, 0.0
        %v1027 = vld [vmem:[%s3] sm:$0xff]
        %v1028 = vld [vmem:[%s4] sm:$0xff]
        %1030 = vset.pattern.permute.xlu0 0
        %1031 = vperm.xlu0 %1030, %v1028
        %v1032 = vpop.permute.xlu0 %1031
        %v1035 = vsel %vm776, %v1027, 0
        %1037 = vmatprep.subr.mxu0 0.0
        %1038 = vmatpush1.msra.mxu0 0.0
        %1039 = vmatprep.subr.mxu0 0.0
        %1040 = vmatpush1.msra.mxu0 0.0
        %1041 = vmatprep.subr.mxu0 0.0
        %1042 = vmatpush1.msra.mxu0 0.0
        %1043 = vmatprep.subr.mxu0 0.0
        %1044 = vmatpush1.msra.mxu0 0.0
        %1045 = vmatprep.subr.mxu0 0.0
        %1046 = vmatpush1.msra.mxu0 0.0
        %1047 = vmatprep.subr.mxu0 0.0
        %1048 = vmatpush1.msra.mxu0 0.0
        %1049 = vmatprep.subr.mxu0 0.0
        %1050 = vmatpush1.msra.mxu0 0.0
        %1051 = vmatprep.subr.mxu0 0.0
        %1052 = vmatpush1.msra.mxu0 0.0
        %1053 = vmatprep.subr.mxu0 0.0
        %1054 = vmatpush1.msra.mxu0 0.0
        %1055 = vmatprep.subr.mxu0 0.0
        %1056 = vmatpush1.msra.mxu0 0.0
        %1057 = vmatprep.subr.mxu0 0.0
        %1058 = vmatpush1.msra.mxu0 0.0
        %1059 = vmatprep.subr.mxu0 0.0
        %1060 = vmatpush1.msra.mxu0 0.0
        %1061 = vmatprep.subr.mxu0 %v1020
        %1062 = vmatpush1.msra.mxu0 %v1019
        %1063 = vmatprep.subr.mxu0 %v1012
        %1064 = vmatpush1.msra.mxu0 %v1011
        %1065 = vmatprep.subr.mxu0 %v1004
        %1066 = vmatpush1.msra.mxu0 %v1003
        %1067 = vmatprep.subr.mxu0 %v996
        %1068 = vmatpush1.msra.mxu0 %v995
        %1069 = vmatprep.subr.mxu0 0.0
        %1070 = vmatpush2.msra.mxu0 0.0
        %1071 = vmatprep.subr.mxu0 0.0
        %1072 = vmatpush2.msra.mxu0 0.0
        %1073 = vmatprep.subr.mxu0 0.0
        %1074 = vmatpush2.msra.mxu0 0.0
        %1075 = vmatprep.subr.mxu0 0.0
        %1076 = vmatpush2.msra.mxu0 0.0
        %1077 = vmatprep.subr.mxu0 0.0
        %1078 = vmatpush2.msra.mxu0 0.0
        %1079 = vmatprep.subr.mxu0 0.0
        %1080 = vmatpush2.msra.mxu0 0.0
        %1081 = vmatprep.subr.mxu0 0.0
        %1082 = vmatpush2.msra.mxu0 0.0
        %1083 = vmatprep.subr.mxu0 0.0
        %1084 = vmatpush2.msra.mxu0 0.0
        %1085 = vmatprep.subr.mxu0 0.0
        %1086 = vmatpush2.msra.mxu0 0.0
        %1087 = vmatprep.subr.mxu0 0.0
        %1088 = vmatpush2.msra.mxu0 0.0
        %1089 = vmatprep.subr.mxu0 0.0
        %1090 = vmatpush2.msra.mxu0 0.0
        %1091 = vmatprep.subr.mxu0 0.0
        %1092 = vmatpush2.msra.mxu0 0.0
        %1093 = vmatprep.subr.mxu0 0.0
        %1094 = vmatpush2.msra.mxu0 0.0
        %1095 = vmatprep.subr.mxu0 0.0
        %1096 = vmatpush2.msra.mxu0 0.0
        %1097 = vmatprep.subr.mxu0 0.0
        %1098 = vmatpush2.msra.mxu0 0.0
        %1099 = vmatprep.subr.mxu0 0.0
        %1100 = vmatpush2.msra.mxu0 0.0
        %1101 = vmatprep.mubr.f32.mxu0 0.0
        %1102 = vmatmul.mubr.f32.gmra.mxu0 %v1035
        %v1103 = vpop.f32.mrf.mxu0
        %v1104 = vadd.f32 %v1032, %v1103
        %v1105 = vpop.f32.mrf.mxu0
        %v1106 = vadd.f32 %v1032, %v1105
        %1107 = vdwg.mxu0
        %1108 = vmatprep.subr.mxu0 0.0
        %1109 = vmatpush1.msra.mxu0 0.0
        %1110 = vmatprep.subr.mxu0 0.0
        %1111 = vmatpush1.msra.mxu0 0.0
        %1112 = vmatprep.subr.mxu0 0.0
        %1113 = vmatpush1.msra.mxu0 0.0
        %1114 = vmatprep.subr.mxu0 0.0
        %1115 = vmatpush1.msra.mxu0 0.0
        %1116 = vmatprep.subr.mxu0 0.0
        %1117 = vmatpush1.msra.mxu0 0.0
        %1118 = vmatprep.subr.mxu0 0.0
        %1119 = vmatpush1.msra.mxu0 0.0
        %1120 = vmatprep.subr.mxu0 0.0
        %1121 = vmatpush1.msra.mxu0 0.0
        %1122 = vmatprep.subr.mxu0 0.0
        %1123 = vmatpush1.msra.mxu0 0.0
        %1124 = vmatprep.subr.mxu0 0.0
        %1125 = vmatpush1.msra.mxu0 0.0
        %1126 = vmatprep.subr.mxu0 0.0
        %1127 = vmatpush1.msra.mxu0 0.0
        %1128 = vmatprep.subr.mxu0 0.0
        %1129 = vmatpush1.msra.mxu0 0.0
        %1130 = vmatprep.subr.mxu0 0.0
        %1131 = vmatpush1.msra.mxu0 0.0
        %1132 = vmatprep.subr.mxu0 %v1022
        %1133 = vmatpush1.msra.mxu0 %v1021
        %1134 = vmatprep.subr.mxu0 %v1014
        %1135 = vmatpush1.msra.mxu0 %v1013
        %1136 = vmatprep.subr.mxu0 %v1006
        %1137 = vmatpush1.msra.mxu0 %v1005
        %1138 = vmatprep.subr.mxu0 %v998
        %1139 = vmatpush1.msra.mxu0 %v997
        %1140 = vmatprep.subr.mxu0 0.0
        %1141 = vmatpush2.msra.mxu0 0.0
        %1142 = vmatprep.subr.mxu0 0.0
        %1143 = vmatpush2.msra.mxu0 0.0
        %1144 = vmatprep.subr.mxu0 0.0
        %1145 = vmatpush2.msra.mxu0 0.0
        %1146 = vmatprep.subr.mxu0 0.0
        %1147 = vmatpush2.msra.mxu0 0.0
        %1148 = vmatprep.subr.mxu0 0.0
        %1149 = vmatpush2.msra.mxu0 0.0
        %1150 = vmatprep.subr.mxu0 0.0
        %1151 = vmatpush2.msra.mxu0 0.0
        %1152 = vmatprep.subr.mxu0 0.0
        %1153 = vmatpush2.msra.mxu0 0.0
        %1154 = vmatprep.subr.mxu0 0.0
        %1155 = vmatpush2.msra.mxu0 0.0
        %1156 = vmatprep.subr.mxu0 0.0
        %1157 = vmatpush2.msra.mxu0 0.0
        %1158 = vmatprep.subr.mxu0 0.0
        %1159 = vmatpush2.msra.mxu0 0.0
        %1160 = vmatprep.subr.mxu0 0.0
        %1161 = vmatpush2.msra.mxu0 0.0
        %1162 = vmatprep.subr.mxu0 0.0
        %1163 = vmatpush2.msra.mxu0 0.0
        %1164 = vmatprep.subr.mxu0 0.0
        %1165 = vmatpush2.msra.mxu0 0.0
        %1166 = vmatprep.subr.mxu0 0.0
        %1167 = vmatpush2.msra.mxu0 0.0
        %1168 = vmatprep.subr.mxu0 0.0
        %1169 = vmatpush2.msra.mxu0 0.0
        %1170 = vmatprep.subr.mxu0 0.0
        %1171 = vmatpush2.msra.mxu0 0.0
        %1172 = vmatprep.mubr.f32.mxu0 0.0
        %1173 = vmatmul.mubr.f32.gmra.mxu0 %v1035
        %v1174 = vpop.f32.mrf.mxu0
        %v1175 = vadd.f32 %v1032, %v1174
        %v1176 = vpop.f32.mrf.mxu0
        %v1177 = vadd.f32 %v1032, %v1176
        %1178 = vdwg.mxu0
        %1179 = vmatprep.subr.mxu0 0.0
        %1180 = vmatpush1.msra.mxu0 0.0
        %1181 = vmatprep.subr.mxu0 0.0
        %1182 = vmatpush1.msra.mxu0 0.0
        %1183 = vmatprep.subr.mxu0 0.0
        %1184 = vmatpush1.msra.mxu0 0.0
        %1185 = vmatprep.subr.mxu0 0.0
        %1186 = vmatpush1.msra.mxu0 0.0
        %1187 = vmatprep.subr.mxu0 0.0
        %1188 = vmatpush1.msra.mxu0 0.0
        %1189 = vmatprep.subr.mxu0 0.0
        %1190 = vmatpush1.msra.mxu0 0.0
        %1191 = vmatprep.subr.mxu0 0.0
        %1192 = vmatpush1.msra.mxu0 0.0
        %1193 = vmatprep.subr.mxu0 0.0
        %1194 = vmatpush1.msra.mxu0 0.0
        %1195 = vmatprep.subr.mxu0 0.0
        %1196 = vmatpush1.msra.mxu0 0.0
        %1197 = vmatprep.subr.mxu0 0.0
        %1198 = vmatpush1.msra.mxu0 0.0
        %1199 = vmatprep.subr.mxu0 0.0
        %1200 = vmatpush1.msra.mxu0 0.0
        %1201 = vmatprep.subr.mxu0 0.0
        %1202 = vmatpush1.msra.mxu0 0.0
        %1203 = vmatprep.subr.mxu0 %v1024
        %1204 = vmatpush1.msra.mxu0 %v1023
        %1205 = vmatprep.subr.mxu0 %v1016
        %1206 = vmatpush1.msra.mxu0 %v1015
        %1207 = vmatprep.subr.mxu0 %v1008
        %1208 = vmatpush1.msra.mxu0 %v1007
        %1209 = vmatprep.subr.mxu0 %v1000
        %1210 = vmatpush1.msra.mxu0 %v999
        %1211 = vmatprep.subr.mxu0 0.0
        %1212 = vmatpush2.msra.mxu0 0.0
        %1213 = vmatprep.subr.mxu0 0.0
        %1214 = vmatpush2.msra.mxu0 0.0
        %1215 = vmatprep.subr.mxu0 0.0
        %1216 = vmatpush2.msra.mxu0 0.0
        %1217 = vmatprep.subr.mxu0 0.0
        %1218 = vmatpush2.msra.mxu0 0.0
        %1219 = vmatprep.subr.mxu0 0.0
        %1220 = vmatpush2.msra.mxu0 0.0
        %1221 = vmatprep.subr.mxu0 0.0
        %1222 = vmatpush2.msra.mxu0 0.0
        %1223 = vmatprep.subr.mxu0 0.0
        %1224 = vmatpush2.msra.mxu0 0.0
        %1225 = vmatprep.subr.mxu0 0.0
        %1226 = vmatpush2.msra.mxu0 0.0
        %1227 = vmatprep.subr.mxu0 0.0
        %1228 = vmatpush2.msra.mxu0 0.0
        %1229 = vmatprep.subr.mxu0 0.0
        %1230 = vmatpush2.msra.mxu0 0.0
        %1231 = vmatprep.subr.mxu0 0.0
        %1232 = vmatpush2.msra.mxu0 0.0
        %1233 = vmatprep.subr.mxu0 0.0
        %1234 = vmatpush2.msra.mxu0 0.0
        %1235 = vmatprep.subr.mxu0 0.0
        %1236 = vmatpush2.msra.mxu0 0.0
        %1237 = vmatprep.subr.mxu0 0.0
        %1238 = vmatpush2.msra.mxu0 0.0
        %1239 = vmatprep.subr.mxu0 0.0
        %1240 = vmatpush2.msra.mxu0 0.0
        %1241 = vmatprep.subr.mxu0 0.0
        %1242 = vmatpush2.msra.mxu0 0.0
        %1243 = vmatprep.mubr.f32.mxu0 0.0
        %1244 = vmatmul.mubr.f32.gmra.mxu0 %v1035
        %v1245 = vpop.f32.mrf.mxu0
        %v1246 = vadd.f32 %v1032, %v1245
        %v1247 = vpop.f32.mrf.mxu0
        %v1248 = vadd.f32 %v1032, %v1247
        %1249 = vdwg.mxu0
        %1250 = vmatprep.subr.mxu0 0.0
        %1251 = vmatpush1.msra.mxu0 0.0
        %1252 = vmatprep.subr.mxu0 0.0
        %1253 = vmatpush1.msra.mxu0 0.0
        %1254 = vmatprep.subr.mxu0 0.0
        %1255 = vmatpush1.msra.mxu0 0.0
        %1256 = vmatprep.subr.mxu0 0.0
        %1257 = vmatpush1.msra.mxu0 0.0
        %1258 = vmatprep.subr.mxu0 0.0
        %1259 = vmatpush1.msra.mxu0 0.0
        %1260 = vmatprep.subr.mxu0 0.0
        %1261 = vmatpush1.msra.mxu0 0.0
        %1262 = vmatprep.subr.mxu0 0.0
        %1263 = vmatpush1.msra.mxu0 0.0
        %1264 = vmatprep.subr.mxu0 0.0
        %1265 = vmatpush1.msra.mxu0 0.0
        %1266 = vmatprep.subr.mxu0 0.0
        %1267 = vmatpush1.msra.mxu0 0.0
        %1268 = vmatprep.subr.mxu0 0.0
        %1269 = vmatpush1.msra.mxu0 0.0
        %1270 = vmatprep.subr.mxu0 0.0
        %1271 = vmatpush1.msra.mxu0 0.0
        %1272 = vmatprep.subr.mxu0 0.0
        %1273 = vmatpush1.msra.mxu0 0.0
        %1274 = vmatprep.subr.mxu0 %v1026
        %1275 = vmatpush1.msra.mxu0 %v1025
        %1276 = vmatprep.subr.mxu0 %v1018
        %1277 = vmatpush1.msra.mxu0 %v1017
        %1278 = vmatprep.subr.mxu0 %v1010
        %1279 = vmatpush1.msra.mxu0 %v1009
        %1280 = vmatprep.subr.mxu0 %v1002
        %1281 = vmatpush1.msra.mxu0 %v1001
        %1282 = vmatprep.subr.mxu0 0.0
        %1283 = vmatpush2.msra.mxu0 0.0
        %1284 = vmatprep.subr.mxu0 0.0
        %1285 = vmatpush2.msra.mxu0 0.0
        %1286 = vmatprep.subr.mxu0 0.0
        %1287 = vmatpush2.msra.mxu0 0.0
        %1288 = vmatprep.subr.mxu0 0.0
        %1289 = vmatpush2.msra.mxu0 0.0
        %1290 = vmatprep.subr.mxu0 0.0
        %1291 = vmatpush2.msra.mxu0 0.0
        %1292 = vmatprep.subr.mxu0 0.0
        %1293 = vmatpush2.msra.mxu0 0.0
        %1294 = vmatprep.subr.mxu0 0.0
        %1295 = vmatpush2.msra.mxu0 0.0
        %1296 = vmatprep.subr.mxu0 0.0
        %1297 = vmatpush2.msra.mxu0 0.0
        %1298 = vmatprep.subr.mxu0 0.0
        %1299 = vmatpush2.msra.mxu0 0.0
        %1300 = vmatprep.subr.mxu0 0.0
        %1301 = vmatpush2.msra.mxu0 0.0
        %1302 = vmatprep.subr.mxu0 0.0
        %1303 = vmatpush2.msra.mxu0 0.0
        %1304 = vmatprep.subr.mxu0 0.0
        %1305 = vmatpush2.msra.mxu0 0.0
        %1306 = vmatprep.subr.mxu0 0.0
        %1307 = vmatpush2.msra.mxu0 0.0
        %1308 = vmatprep.subr.mxu0 0.0
        %1309 = vmatpush2.msra.mxu0 0.0
        %1310 = vmatprep.subr.mxu0 0.0
        %1311 = vmatpush2.msra.mxu0 0.0
        %1312 = vmatprep.subr.mxu0 0.0
        %1313 = vmatpush2.msra.mxu0 0.0
        %1314 = vmatprep.mubr.f32.mxu0 0.0
        %1315 = vmatmul.mubr.f32.gmra.mxu0 %v1035
        %v1316 = vpop.f32.mrf.mxu0
        %v1317 = vadd.f32 %v1032, %v1316
        %v1318 = vpop.f32.mrf.mxu0
        %v1319 = vadd.f32 %v1032, %v1318
        %1320 = vdwg.mxu0
        %1321 = vst [vmem:[#allocation2] sm:$0xff] %v1104
        %s1322 = scalar_lea.vmem [#allocation2], 8
        %1323 = vst [vmem:[%s1322] sm:$0xff] %v1106
        %s1324 = scalar_lea.vmem [#allocation2], 16
        %1325 = vst [vmem:[%s1324] sm:$0xff] %v1175
        %s1326 = scalar_lea.vmem [#allocation2], 24
        %1327 = vst [vmem:[%s1326] sm:$0xff] %v1177
        %s1328 = scalar_lea.vmem [#allocation2], 32
        %1329 = vst [vmem:[%s1328] sm:$0xff] %v1246
        %s1330 = scalar_lea.vmem [#allocation2], 40
        %1331 = vst [vmem:[%s1330] sm:$0xff] %v1248
        %s1332 = scalar_lea.vmem [#allocation2], 48
        %1333 = vst [vmem:[%s1332] sm:$0xff] %v1317
        %s1334 = scalar_lea.vmem [#allocation2], 56
        %1335 = vst [vmem:[%s1334] sm:$0xff] %v1319
        %v1336 = vld [vmem:[%s5] sm:$0xff]
        %v1337 = vlaneseq
        %v1338 = vshrl.u32 %v1337, 7
        %vm1339 = vcmp.eq.s32.totalorder %v1338, 2
        %v1340 = vld [vmem:[#allocation2] sm:$0xff]
        %1342 = vset.pattern.permute.xlu0 0
        %1343 = vperm.xlu0 %1342, %v1336
        %v1344 = vpop.permute.xlu0 %1343
        %v1346 = vmul.f32 %v1344, 0.0
        %v1347 = vadd.f32 %v1340, %v1346
        %v1348 = vxor.u32 %v1347, 2147483648
        %v1349 = vmul.f32 %v1348, 1.442695
        %v1350 = vpow.pop %v1349
        %v1351 = vadd.f32 %v1350, 1.0
        %v1352 = vrcp.pop %v1351
        %v1353 = vmul.f32 1.0, %v1352
        %v1354 = vmul.f32 %v1353, 2.0
        %v1355 = vsub.f32 %v1354, 1.0
        %v1356 = vsel %vm1339, %v1355, %v1353
        %v1357 = vmul.f32 %v1356, 0.0
        %v1359 = vrot.slane %v1356, 2
        %v1361 = vmul.f32 %v1356, %v1359
        %v1363 = vrot.slane %v1361, 7
        %v1365 = vadd.f32 %v1357, %v1363
        %v1366 = vtanh.pop %v1365
        %v1368 = vrot.slane %v1366, 6
        %v1370 = vmul.f32 %v1356, %v1368
        %v1371 = vld [vmem:[%s1322] sm:$0xff]
        %v1372 = vlaneseq
        %v1373 = vshrl.u32 %v1372, 7
        %v1374 = vsub.s32 3, %v1373
        %v1375 = vrot.slane %v1370, %v1374
        %v1376 = vmul.f32 %v1375, %v1344
        %v1377 = vadd.f32 %v1371, %v1376
        %v1378 = vxor.u32 %v1377, 2147483648
        %v1379 = vmul.f32 %v1378, 1.442695
        %v1380 = vpow.pop %v1379
        %v1381 = vadd.f32 %v1380, 1.0
        %v1382 = vrcp.pop %v1381
        %v1383 = vmul.f32 1.0, %v1382
        %v1384 = vmul.f32 %v1383, 2.0
        %v1385 = vsub.f32 %v1384, 1.0
        %v1386 = vsel %vm1339, %v1385, %v1383
        %v1387 = vmul.f32 %v1386, %v1365
        %v1389 = vrot.slane %v1386, 2
        %v1391 = vmul.f32 %v1386, %v1389
        %v1393 = vrot.slane %v1391, 7
        %v1395 = vadd.f32 %v1387, %v1393
        %v1396 = vtanh.pop %v1395
        %v1398 = vrot.slane %v1396, 6
        %v1400 = vmul.f32 %v1386, %v1398
        %v1401 = vld [vmem:[%s1324] sm:$0xff]
        %v1402 = vlaneseq
        %v1403 = vshrl.u32 %v1402, 7
        %v1404 = vsub.s32 3, %v1403
        %v1405 = vrot.slane %v1400, %v1404
        %v1406 = vmul.f32 %v1405, %v1344
        %v1407 = vadd.f32 %v1401, %v1406
        %v1408 = vxor.u32 %v1407, 2147483648
        %v1409 = vmul.f32 %v1408, 1.442695
        %v1410 = vpow.pop %v1409
        %v1411 = vadd.f32 %v1410, 1.0
        %v1412 = vrcp.pop %v1411
        %v1413 = vmul.f32 1.0, %v1412
        %v1414 = vmul.f32 %v1413, 2.0
        %v1415 = vsub.f32 %v1414, 1.0
        %v1416 = vsel %vm1339, %v1415, %v1413
        %v1417 = vmul.f32 %v1416, %v1395
        %v1419 = vrot.slane %v1416, 2
        %v1421 = vmul.f32 %v1416, %v1419
        %v1423 = vrot.slane %v1421, 7
        %v1425 = vadd.f32 %v1417, %v1423
        %v1426 = vtanh.pop %v1425
        %v1428 = vrot.slane %v1426, 6
        %v1430 = vmul.f32 %v1416, %v1428
        %v1431 = vld [vmem:[%s1326] sm:$0xff]
        %v1432 = vlaneseq
        %v1433 = vshrl.u32 %v1432, 7
        %v1434 = vsub.s32 3, %v1433
        %v1435 = vrot.slane %v1430, %v1434
        %v1436 = vmul.f32 %v1435, %v1344
        %v1437 = vadd.f32 %v1431, %v1436
        %v1438 = vxor.u32 %v1437, 2147483648
        %v1439 = vmul.f32 %v1438, 1.442695
        %v1440 = vpow.pop %v1439
        %v1441 = vadd.f32 %v1440, 1.0
        %v1442 = vrcp.pop %v1441
        %v1443 = vmul.f32 1.0, %v1442
        %v1444 = vmul.f32 %v1443, 2.0
        %v1445 = vsub.f32 %v1444, 1.0
        %v1446 = vsel %vm1339, %v1445, %v1443
        %v1447 = vmul.f32 %v1446, %v1425
        %v1449 = vrot.slane %v1446, 2
        %v1451 = vmul.f32 %v1446, %v1449
        %v1453 = vrot.slane %v1451, 7
        %v1455 = vadd.f32 %v1447, %v1453
        %v1456 = vtanh.pop %v1455
        %v1458 = vrot.slane %v1456, 6
        %v1460 = vmul.f32 %v1446, %v1458
        %v1461 = vld [vmem:[%s1328] sm:$0xff]
        %v1462 = vlaneseq
        %v1463 = vshrl.u32 %v1462, 7
        %v1464 = vsub.s32 3, %v1463
        %v1465 = vrot.slane %v1460, %v1464
        %v1466 = vmul.f32 %v1465, %v1344
        %v1467 = vadd.f32 %v1461, %v1466
        %v1468 = vxor.u32 %v1467, 2147483648
        %v1469 = vmul.f32 %v1468, 1.442695
        %v1470 = vpow.pop %v1469
        %v1471 = vadd.f32 %v1470, 1.0
        %v1472 = vrcp.pop %v1471
        %v1473 = vmul.f32 1.0, %v1472
        %v1474 = vmul.f32 %v1473, 2.0
        %v1475 = vsub.f32 %v1474, 1.0
        %v1476 = vsel %vm1339, %v1475, %v1473
        %v1477 = vmul.f32 %v1476, %v1455
        %v1479 = vrot.slane %v1476, 2
        %v1481 = vmul.f32 %v1476, %v1479
        %v1483 = vrot.slane %v1481, 7
        %v1485 = vadd.f32 %v1477, %v1483
        %v1486 = vtanh.pop %v1485
        %v1488 = vrot.slane %v1486, 6
        %v1490 = vmul.f32 %v1476, %v1488
        %v1491 = vld [vmem:[%s1330] sm:$0xff]
        %v1492 = vlaneseq
        %v1493 = vshrl.u32 %v1492, 7
        %v1494 = vsub.s32 3, %v1493
        %v1495 = vrot.slane %v1490, %v1494
        %v1496 = vmul.f32 %v1495, %v1344
        %v1497 = vadd.f32 %v1491, %v1496
        %v1498 = vxor.u32 %v1497, 2147483648
        %v1499 = vmul.f32 %v1498, 1.442695
        %v1500 = vpow.pop %v1499
        %v1501 = vadd.f32 %v1500, 1.0
        %v1502 = vrcp.pop %v1501
        %v1503 = vmul.f32 1.0, %v1502
        %v1504 = vmul.f32 %v1503, 2.0
        %v1505 = vsub.f32 %v1504, 1.0
        %v1506 = vsel %vm1339, %v1505, %v1503
        %v1507 = vmul.f32 %v1506, %v1485
        %v1509 = vrot.slane %v1506, 2
        %v1511 = vmul.f32 %v1506, %v1509
        %v1513 = vrot.slane %v1511, 7
        %v1515 = vadd.f32 %v1507, %v1513
        %v1516 = vtanh.pop %v1515
        %v1518 = vrot.slane %v1516, 6
        %v1520 = vmul.f32 %v1506, %v1518
        %v1521 = vld [vmem:[%s1332] sm:$0xff]
        %v1522 = vlaneseq
        %v1523 = vshrl.u32 %v1522, 7
        %v1524 = vsub.s32 3, %v1523
        %v1525 = vrot.slane %v1520, %v1524
        %v1526 = vmul.f32 %v1525, %v1344
        %v1527 = vadd.f32 %v1521, %v1526
        %v1528 = vxor.u32 %v1527, 2147483648
        %v1529 = vmul.f32 %v1528, 1.442695
        %v1530 = vpow.pop %v1529
        %v1531 = vadd.f32 %v1530, 1.0
        %v1532 = vrcp.pop %v1531
        %v1533 = vmul.f32 1.0, %v1532
        %v1534 = vmul.f32 %v1533, 2.0
        %v1535 = vsub.f32 %v1534, 1.0
        %v1536 = vsel %vm1339, %v1535, %v1533
        %v1537 = vmul.f32 %v1536, %v1515
        %v1539 = vrot.slane %v1536, 2
        %v1541 = vmul.f32 %v1536, %v1539
        %v1543 = vrot.slane %v1541, 7
        %v1545 = vadd.f32 %v1537, %v1543
        %v1546 = vtanh.pop %v1545
        %v1548 = vrot.slane %v1546, 6
        %v1550 = vmul.f32 %v1536, %v1548
        %v1551 = vld [vmem:[%s1334] sm:$0xff]
        %v1552 = vlaneseq
        %v1553 = vshrl.u32 %v1552, 7
        %v1554 = vsub.s32 3, %v1553
        %v1555 = vrot.slane %v1550, %v1554
        %v1556 = vmul.f32 %v1555, %v1344
        %v1557 = vadd.f32 %v1551, %v1556
        %v1558 = vxor.u32 %v1557, 2147483648
        %v1559 = vmul.f32 %v1558, 1.442695
        %v1560 = vpow.pop %v1559
        %v1561 = vadd.f32 %v1560, 1.0
        %v1562 = vrcp.pop %v1561
        %v1563 = vmul.f32 1.0, %v1562
        %v1564 = vmul.f32 %v1563, 2.0
        %v1565 = vsub.f32 %v1564, 1.0
        %v1566 = vsel %vm1339, %v1565, %v1563
        %v1567 = vmul.f32 %v1566, %v1545
        %v1569 = vrot.slane %v1566, 2
        %v1571 = vmul.f32 %v1566, %v1569
        %v1573 = vrot.slane %v1571, 7
        %v1575 = vadd.f32 %v1567, %v1573
        %v1576 = vtanh.pop %v1575
        %v1578 = vrot.slane %v1576, 6
        %v1580 = vmul.f32 %v1566, %v1578
        %v1581 = vxor.u32 %v1580, 2147483648
        %v1582 = vmul.f32 %v1581, 1.442695
        %v1583 = vpow.pop %v1582
        %v1584 = vadd.f32 %v1583, 1.0
        %v1585 = vrcp.pop %v1584
        %v1586 = vmul.f32 1.0, %v1585
        %1587 = vst [vmem:[%s243 - $0x3] sm:$0x8] %v1586
        %s1588 = sand.u32 %s159, 1
        %s1589 = scalar_lea.sflag [#allocation4], %s1588
        %s1590 = sand.u32 %s159, 1
        %s1591 = scalar_lea.vmem [#allocation3], %s1590
        // Predicated region
        $region45: #{sscl_forward.1} parent=43 // pred_check
          %p1592 = pneg %p169
        $region46: #{sscl_forward.1} parent=43 // pred_check_branch
          %1594 = sbr.rel (%p1592) target = $region48
        $region47: #{sscl_forward.1} parent=43 // pred_region
          %s1596 = ssub.s32 16, 16
          %1597 = vsyncadd %s1589, %s1596
          %s1598 = smul.addr %s20, 16
          %s1599 = scalar_lea.hbm %s6, %s1598
          %s1601 = sshll.u32 %s1591, 4
          %s1602 = int_to_ptr.vmem [resolvable:$true] %s1601
          %1604 = dma.vmem_to_hbm [thread:$0]  %s1602, 16, %s1599, %s1589
        $region48: #{sscl_forward.1} parent=43 // pred_fallthru
          _
      $region44: #{sscl_forward.1} parent=5 // pred_fallthru
        _
      %p1605 = scmp.le.s32.totalorder 2, %s15
      // Predicated region
      $region49: #{sscl_forward.1} parent=5 // pred_check
        %p1606 = pneg %p1605
      $region50: #{sscl_forward.1} parent=5 // pred_check_branch
        %1608 = sbr.rel (%p1606) target = $region52
      $region51: #{sscl_forward.1} parent=5 // pred_region
        %s1609 = ssub.s32 %s15, 2
        // Predicated region
        $region53: #{sscl_forward.1} parent=51 // pred_check
          %p1610 = pneg %p175
        $region54: #{sscl_forward.1} parent=51 // pred_check_branch
          %1612 = sbr.rel (%p1610) target = $region56
        $region55: #{sscl_forward.1} parent=51 // pred_region
          %s1613 = sand.u32 %s160, 1
          %s1614 = scalar_lea.sflag [#allocation4], %s1613
          %s1615 = sand.u32 %s160, 1
          %s1616 = scalar_lea.vmem [#allocation3], %s1615
          %1617 = dma.done %s1614, 16
        $region56: #{sscl_forward.1} parent=51 // pred_fallthru
          _
      $region52: #{sscl_forward.1} parent=5 // pred_fallthru
        _
    $region6: #{sscl_forward.1} parent=1 // loop_footer
      %s19 = sadd.s32 1, %s15
    $region7: #{sscl_forward.1} parent=1 // loop_footer_branch
      %14 = sbr.rel target = $region3
    $region8: #{sscl_forward.1} parent=1 // loop_exit
      _
    %1618 = vsyncpa [#allocation4], 1
    %s1619 = scalar_lea.sflag [#allocation4], 1
    %1620 = vsyncpa %s1619, 1

</llo_original>
